<compile_context>
chip_gen: v6e
topology: v6e:2x2x1
jax: 0.10.0
libtpu: 0.0.40
codegen_flags: <defaults>
</compile_context>

<pallas_src>
import jax
import jax.numpy as jnp
from jax import lax
from jax.experimental import pallas as pl
from jax.experimental.pallas import tpu as pltpu

K_NEIGHBORS = 5          # sklearn KNeighborsRegressor default
BIG = 3.0e38             # "+inf" sentinel for padded / already-selected columns


def knn_predict_kernel(xq_ref, xt_ref, tth_ref, yk_ref, out_ref):
    q = xq_ref[...]        # (tm, D)  f32 query tile
    t = xt_ref[...]        # (N,  D)  f32 training features (VMEM-resident)
    tth = tth_ref[...]     # (1,  N)  f32 precomputed 0.5*||t||^2 (BIG on padding)
    yk = yk_ref[...]       # (1,  N)  f32 training targets already scaled by 1/K

    tm = q.shape[0]
    n = t.shape[0]

    # Cross term on the MXU, contracting D of both operands (no explicit t.T).
    cross = lax.dot_general(
        q, t, dimension_numbers=(((1,), (1,)), ((), ())),
        preferred_element_type=jnp.float32)                      # (tm, N)

    # dist = 0.5*||t||^2 - q.t  ==  0.5*(||q-t||^2 - ||q||^2): the per-row
    # ||q||^2 constant and the global 0.5 scale never change the per-row argmin.
    dist = tth - cross                                           # (tm, N)

    # Column indices as f32 (hoisted out of the loop; avoids int32 relayout in
    # the tie-break reduction).
    colf = lax.broadcasted_iota(jnp.int32, (tm, n), 1).astype(jnp.float32)
    big = jnp.float32(BIG)
    nf = jnp.float32(n)

    def body(_, carry):
        d, sel_total = carry
        dmin = jnp.min(d, axis=-1, keepdims=True)                # (tm, 1) f32 reduce
        # Tie-break by smallest index (matches stable argsort / the reference);
        # kept fully in f32 so both cross-lane reductions share one layout.
        cand = jnp.where(d <= dmin, colf, nf)
        idx = jnp.min(cand, axis=-1, keepdims=True)              # (tm, 1) f32 reduce
        sel = colf == idx                                        # one-hot (tm, N)
        sel_total = sel_total + sel.astype(jnp.float32)
        d = jnp.where(sel, big, d)                               # remove chosen col
        return d, sel_total

    init = (dist, jnp.zeros((tm, n), jnp.float32))
    _, sel_total = lax.fori_loop(0, K_NEIGHBORS, body, init, unroll=True)

    # Single MXU gather of the 5 selected (pre-scaled) targets per row:
    # (1, N) x (tm, N) contracted over N -> (1, tm), lane-dense output row.
    out_ref[...] = lax.dot_general(
        yk, sel_total, dimension_numbers=(((1,), (1,)), ((), ())),
        preferred_element_type=jnp.float32)


def knn_predict(x_query, x_train, y_train, *, tm=None):
    """Pallas KNN-regression predict: uniform mean of the 5 nearest neighbors."""
    M, D = x_query.shape
    N = x_train.shape[0]

    # Adaptive query-tile size: 128 keeps the lane-dense output block aligned,
    # halves the (tm, N) temporary footprint vs 256 (v7x/v5e VMEM), and yields
    # >= 2 grid steps (both v7x TensorCores busy) whenever M > 128.
    if tm is None:
        tm = min(128, pl.cdiv(M, 128) * 128)
    assert tm % 128 == 0

    m_pad = pl.cdiv(M, tm) * tm
    n_pad = pl.cdiv(N, 128) * 128

    xq = jnp.zeros((m_pad, D), jnp.float32).at[:M].set(x_query.astype(jnp.float32))
    xt = jnp.zeros((n_pad, D), jnp.float32).at[:N].set(x_train.astype(jnp.float32))
    # Padded training columns get a huge half-norm so they can never be selected.
    tth = jnp.full((1, n_pad), BIG, jnp.float32).at[0, :N].set(
        0.5 * jnp.sum(x_train.astype(jnp.float32) ** 2, axis=-1))
    # Fold the 1/K of the uniform mean into the targets (one-time (1, N) scale).
    yk = jnp.zeros((1, n_pad), jnp.float32).at[0, :N].set(
        y_train.astype(jnp.float32) * (1.0 / K_NEIGHBORS))

    def build(single_buffer_invariants):
        # x_train / tth / yk have a constant block index -> DMA'd once; request
        # a single VMEM buffer for them instead of the default double buffer.
        inv = {}
        if single_buffer_invariants and hasattr(pl, "Buffered"):
            inv = dict(pipeline_mode=pl.Buffered(1))
        return pl.pallas_call(
            knn_predict_kernel,
            out_shape=jax.ShapeDtypeStruct((1, m_pad), jnp.float32),
            grid=(m_pad // tm,),
            in_specs=[
                pl.BlockSpec((tm, D), lambda i: (i, 0)),           # query tile (pipelined)
                pl.BlockSpec((n_pad, D), lambda i: (0, 0), **inv),  # training features
                pl.BlockSpec((1, n_pad), lambda i: (0, 0), **inv),  # 0.5*||t||^2
                pl.BlockSpec((1, n_pad), lambda i: (0, 0), **inv),  # targets / K
            ],
            out_specs=pl.BlockSpec((1, tm), lambda i: (0, i)),       # lane-dense row
            compiler_params=pltpu.CompilerParams(
                dimension_semantics=("parallel",),
                vmem_limit_bytes=48 * 1024 * 1024),
        )

    try:
        out = build(True)(xq, xt, tth, yk)
    except Exception:
        # pipeline_mode=pl.Buffered(1) unsupported in this JAX/Mosaic version:
        # fall back to default double-buffered invariant inputs (semantics identical).
        out = build(False)(xq, xt, tth, yk)
    return out[0, :M]


def knn_predict_ref(x_query, x_train, y_train, k=K_NEIGHBORS):
    """Pure-JAX reference (mirrors sklearn uniform-weight KNN predict)."""
    d = jnp.sum((x_query[:, None, :] - x_train[None, :, :]) ** 2, axis=-1)
    idx = jnp.argsort(d, axis=-1)[:, :k]
    return jnp.mean(y_train[idx], axis=-1)


if __name__ == "__main__":
    key = jax.random.PRNGKey(0)
    k_train_x, k_train_y, k_query = jax.random.split(key, 3)

    N_TRAIN, D, M_QUERY = 128, 16, 8

    # "fit": deterministically generated training set held as parameters.
    x_train = jax.random.normal(k_train_x, (N_TRAIN, D), dtype=jnp.float32)
    y_train = jax.random.normal(k_train_y, (N_TRAIN,), dtype=jnp.float32)

    # forward(x): predict on query points.
    x_query = jax.random.normal(k_query, (M_QUERY, D), dtype=jnp.float32)

    pred = knn_predict(x_query, x_train, y_train)
    jax.block_until_ready(pred)

    ref = knn_predict_ref(x_query, x_train, y_train)
    assert pred.shape == (M_QUERY,)
    assert jnp.allclose(pred, ref, rtol=1e-4, atol=1e-4), (pred, ref)

    print("KERNEL_OK")
</pallas_src>

<mosaic_0001>
module attributes {stable_mosaic.version = 11 : i64} {
  func.func @knn_predict_kernel(%arg0: i32, %arg1: memref<128x16xf32, #tpu.memory_space<vmem>>, %arg2: memref<128x16xf32, #tpu.memory_space<vmem>>, %arg3: memref<1x128xf32, #tpu.memory_space<vmem>>, %arg4: memref<1x128xf32, #tpu.memory_space<vmem>>, %arg5: memref<1x128xf32, #tpu.memory_space<vmem>>) attributes {dimension_semantics = [#tpu.dimension_semantics<parallel>], iteration_bounds = array<i64: 1>, scalar_prefetch = 0 : i64, scratch_operands = 0 : i64, tpu.core_type = #tpu.core_type<tc>, window_params = [{transform_indices = @transform_0, window_bounds = array<i64: 128, 16>}, {pipeline_mode = #tpu.pipeline_mode<synchronous>, transform_indices = @transform_1, window_bounds = array<i64: 128, 16>}, {pipeline_mode = #tpu.pipeline_mode<synchronous>, transform_indices = @transform_2, window_bounds = array<i64: 1, 128>}, {pipeline_mode = #tpu.pipeline_mode<synchronous>, transform_indices = @transform_3, window_bounds = array<i64: 1, 128>}, {transform_indices = @transform_4, window_bounds = array<i64: 1, 128>}]} {
    %c0 = arith.constant 0 : index
    %c0_0 = arith.constant 0 : index
    %0 = vector.load %arg1[%c0, %c0_0] : memref<128x16xf32, #tpu.memory_space<vmem>>, vector<128x16xf32>
    %c0_1 = arith.constant 0 : index
    %c0_2 = arith.constant 0 : index
    %1 = vector.load %arg2[%c0_1, %c0_2] : memref<128x16xf32, #tpu.memory_space<vmem>>, vector<128x16xf32>
    %c0_3 = arith.constant 0 : index
    %c0_4 = arith.constant 0 : index
    %2 = vector.load %arg3[%c0_3, %c0_4] : memref<1x128xf32, #tpu.memory_space<vmem>>, vector<1x128xf32>
    %c0_5 = arith.constant 0 : index
    %c0_6 = arith.constant 0 : index
    %3 = vector.load %arg4[%c0_5, %c0_6] : memref<1x128xf32, #tpu.memory_space<vmem>>, vector<1x128xf32>
    %cst = arith.constant dense<0.000000e+00> : vector<128x128xf32>
    %4 = tpu.matmul %0, %1, %cst {dimension_numbers = #tpu.dot_dimension_numbers<[1], [1], [0], [0], [0, 0, 1, 0], [], []>} : vector<128x16xf32>, vector<128x16xf32>, vector<128x128xf32> -> vector<128x128xf32>
    %5 = vector.broadcast %2 : vector<1x128xf32> to vector<128x128xf32>
    %6 = arith.subf %5, %4 : vector<128x128xf32>
    %7 = tpu.iota {dimensions = array<i32: 1>} : vector<128x128xi32>
    %8 = arith.sitofp %7 : vector<128x128xi32> to vector<128x128xf32>
    %cst_7 = arith.constant 0.000000e+00 : f32
    %9 = vector.broadcast %cst_7 : f32 to vector<128x128xf32>
    %cst_8 = arith.constant 1.280000e+02 : f32
    %cst_9 = arith.constant 3.000000e+38 : f32
    %c0_i32 = arith.constant 0 : i32
    %cst_10 = arith.constant dense<0x7F800000> : vector<128xf32>
    %10 = vector.multi_reduction <minimumf>, %6, %cst_10 [1] : vector<128x128xf32> to vector<128xf32>
    %11 = vector.shape_cast %10 : vector<128xf32> to vector<128x1xf32>
    %12 = vector.broadcast %11 : vector<128x1xf32> to vector<128x128xf32>
    %13 = arith.cmpf ole, %6, %12 : vector<128x128xf32>
    %14 = vector.broadcast %cst_8 : f32 to vector<128x128xf32>
    %15 = arith.select %13, %8, %14 : vector<128x128xi1>, vector<128x128xf32>
    %cst_11 = arith.constant dense<0x7F800000> : vector<128xf32>
    %16 = vector.multi_reduction <minimumf>, %15, %cst_11 [1] : vector<128x128xf32> to vector<128xf32>
    %17 = vector.shape_cast %16 : vector<128xf32> to vector<128x1xf32>
    %18 = vector.broadcast %17 : vector<128x1xf32> to vector<128x128xf32>
    %19 = arith.cmpf oeq, %8, %18 : vector<128x128xf32>
    %20 = arith.extui %19 : vector<128x128xi1> to vector<128x128xi32>
    %21 = arith.sitofp %20 : vector<128x128xi32> to vector<128x128xf32>
    %22 = arith.addf %9, %21 : vector<128x128xf32>
    %23 = vector.broadcast %cst_9 : f32 to vector<128x128xf32>
    %24 = arith.select %19, %23, %6 : vector<128x128xi1>, vector<128x128xf32>
    %c1_i32 = arith.constant 1 : i32
    %cst_12 = arith.constant dense<0x7F800000> : vector<128xf32>
    %25 = vector.multi_reduction <minimumf>, %24, %cst_12 [1] : vector<128x128xf32> to vector<128xf32>
    %26 = vector.shape_cast %25 : vector<128xf32> to vector<128x1xf32>
    %27 = vector.broadcast %26 : vector<128x1xf32> to vector<128x128xf32>
    %28 = arith.cmpf ole, %24, %27 : vector<128x128xf32>
    %29 = vector.broadcast %cst_8 : f32 to vector<128x128xf32>
    %30 = arith.select %28, %8, %29 : vector<128x128xi1>, vector<128x128xf32>
    %cst_13 = arith.constant dense<0x7F800000> : vector<128xf32>
    %31 = vector.multi_reduction <minimumf>, %30, %cst_13 [1] : vector<128x128xf32> to vector<128xf32>
    %32 = vector.shape_cast %31 : vector<128xf32> to vector<128x1xf32>
    %33 = vector.broadcast %32 : vector<128x1xf32> to vector<128x128xf32>
    %34 = arith.cmpf oeq, %8, %33 : vector<128x128xf32>
    %35 = arith.extui %34 : vector<128x128xi1> to vector<128x128xi32>
    %36 = arith.sitofp %35 : vector<128x128xi32> to vector<128x128xf32>
    %37 = arith.addf %22, %36 : vector<128x128xf32>
    %38 = vector.broadcast %cst_9 : f32 to vector<128x128xf32>
    %39 = arith.select %34, %38, %24 : vector<128x128xi1>, vector<128x128xf32>
    %c2_i32 = arith.constant 2 : i32
    %cst_14 = arith.constant dense<0x7F800000> : vector<128xf32>
    %40 = vector.multi_reduction <minimumf>, %39, %cst_14 [1] : vector<128x128xf32> to vector<128xf32>
    %41 = vector.shape_cast %40 : vector<128xf32> to vector<128x1xf32>
    %42 = vector.broadcast %41 : vector<128x1xf32> to vector<128x128xf32>
    %43 = arith.cmpf ole, %39, %42 : vector<128x128xf32>
    %44 = vector.broadcast %cst_8 : f32 to vector<128x128xf32>
    %45 = arith.select %43, %8, %44 : vector<128x128xi1>, vector<128x128xf32>
    %cst_15 = arith.constant dense<0x7F800000> : vector<128xf32>
    %46 = vector.multi_reduction <minimumf>, %45, %cst_15 [1] : vector<128x128xf32> to vector<128xf32>
    %47 = vector.shape_cast %46 : vector<128xf32> to vector<128x1xf32>
    %48 = vector.broadcast %47 : vector<128x1xf32> to vector<128x128xf32>
    %49 = arith.cmpf oeq, %8, %48 : vector<128x128xf32>
    %50 = arith.extui %49 : vector<128x128xi1> to vector<128x128xi32>
    %51 = arith.sitofp %50 : vector<128x128xi32> to vector<128x128xf32>
    %52 = arith.addf %37, %51 : vector<128x128xf32>
    %53 = vector.broadcast %cst_9 : f32 to vector<128x128xf32>
    %54 = arith.select %49, %53, %39 : vector<128x128xi1>, vector<128x128xf32>
    %c3_i32 = arith.constant 3 : i32
    %cst_16 = arith.constant dense<0x7F800000> : vector<128xf32>
    %55 = vector.multi_reduction <minimumf>, %54, %cst_16 [1] : vector<128x128xf32> to vector<128xf32>
    %56 = vector.shape_cast %55 : vector<128xf32> to vector<128x1xf32>
    %57 = vector.broadcast %56 : vector<128x1xf32> to vector<128x128xf32>
    %58 = arith.cmpf ole, %54, %57 : vector<128x128xf32>
    %59 = vector.broadcast %cst_8 : f32 to vector<128x128xf32>
    %60 = arith.select %58, %8, %59 : vector<128x128xi1>, vector<128x128xf32>
    %cst_17 = arith.constant dense<0x7F800000> : vector<128xf32>
    %61 = vector.multi_reduction <minimumf>, %60, %cst_17 [1] : vector<128x128xf32> to vector<128xf32>
    %62 = vector.shape_cast %61 : vector<128xf32> to vector<128x1xf32>
    %63 = vector.broadcast %62 : vector<128x1xf32> to vector<128x128xf32>
    %64 = arith.cmpf oeq, %8, %63 : vector<128x128xf32>
    %65 = arith.extui %64 : vector<128x128xi1> to vector<128x128xi32>
    %66 = arith.sitofp %65 : vector<128x128xi32> to vector<128x128xf32>
    %67 = arith.addf %52, %66 : vector<128x128xf32>
    %68 = vector.broadcast %cst_9 : f32 to vector<128x128xf32>
    %69 = arith.select %64, %68, %54 : vector<128x128xi1>, vector<128x128xf32>
    %c4_i32 = arith.constant 4 : i32
    %cst_18 = arith.constant dense<0x7F800000> : vector<128xf32>
    %70 = vector.multi_reduction <minimumf>, %69, %cst_18 [1] : vector<128x128xf32> to vector<128xf32>
    %71 = vector.shape_cast %70 : vector<128xf32> to vector<128x1xf32>
    %72 = vector.broadcast %71 : vector<128x1xf32> to vector<128x128xf32>
    %73 = arith.cmpf ole, %69, %72 : vector<128x128xf32>
    %74 = vector.broadcast %cst_8 : f32 to vector<128x128xf32>
    %75 = arith.select %73, %8, %74 : vector<128x128xi1>, vector<128x128xf32>
    %cst_19 = arith.constant dense<0x7F800000> : vector<128xf32>
    %76 = vector.multi_reduction <minimumf>, %75, %cst_19 [1] : vector<128x128xf32> to vector<128xf32>
    %77 = vector.shape_cast %76 : vector<128xf32> to vector<128x1xf32>
    %78 = vector.broadcast %77 : vector<128x1xf32> to vector<128x128xf32>
    %79 = arith.cmpf oeq, %8, %78 : vector<128x128xf32>
    %80 = arith.extui %79 : vector<128x128xi1> to vector<128x128xi32>
    %81 = arith.sitofp %80 : vector<128x128xi32> to vector<128x128xf32>
    %82 = arith.addf %67, %81 : vector<128x128xf32>
    %83 = vector.broadcast %cst_9 : f32 to vector<128x128xf32>
    %84 = arith.select %79, %83, %69 : vector<128x128xi1>, vector<128x128xf32>
    %cst_20 = arith.constant dense<0.000000e+00> : vector<1x128xf32>
    %85 = tpu.matmul %3, %82, %cst_20 {dimension_numbers = #tpu.dot_dimension_numbers<[1], [1], [0], [0], [0, 0, 1, 0], [], []>} : vector<1x128xf32>, vector<128x128xf32>, vector<1x128xf32> -> vector<1x128xf32>
    %c0_21 = arith.constant 0 : index
    %c0_22 = arith.constant 0 : index
    %86 = vector.load %arg5[%c0_21, %c0_22] : memref<1x128xf32, #tpu.memory_space<vmem>>, vector<1x128xf32>
    tpu.vector_store %arg5[%c0_21, %c0_22], %85 {strides = array<i32>} : memref<1x128xf32, #tpu.memory_space<vmem>>, vector<1x128xf32>,
    return
  }
  func.func @transform_0(%arg0: i32) -> (i32, i32) {
    %c0_i32 = arith.constant 0 : i32
    %c0_i32_0 = arith.constant 0 : i32
    return %arg0, %c0_i32 : i32, i32
  }
  func.func @transform_1(%arg0: i32) -> (i32, i32) {
    %c0_i32 = arith.constant 0 : i32
    %c0_i32_0 = arith.constant 0 : i32
    %c0_i32_1 = arith.constant 0 : i32
    return %c0_i32, %c0_i32_0 : i32, i32
  }
  func.func @transform_2(%arg0: i32) -> (i32, i32) {
    %c0_i32 = arith.constant 0 : i32
    %c0_i32_0 = arith.constant 0 : i32
    %c0_i32_1 = arith.constant 0 : i32
    return %c0_i32, %c0_i32_0 : i32, i32
  }
  func.func @transform_3(%arg0: i32) -> (i32, i32) {
    %c0_i32 = arith.constant 0 : i32
    %c0_i32_0 = arith.constant 0 : i32
    %c0_i32_1 = arith.constant 0 : i32
    return %c0_i32, %c0_i32_0 : i32, i32
  }
  func.func @transform_4(%arg0: i32) -> (i32, i32) {
    %c0_i32 = arith.constant 0 : i32
    %c0_i32_0 = arith.constant 0 : i32
    return %c0_i32, %arg0 : i32, i32
  }
}

module attributes {stable_mosaic.version = 11 : i64} {
  func.func @knn_predict_kernel(%arg0: i32, %arg1: memref<128x16xf32, #tpu.memory_space<vmem>>, %arg2: memref<128x16xf32, #tpu.memory_space<vmem>>, %arg3: memref<1x128xf32, #tpu.memory_space<vmem>>, %arg4: memref<1x128xf32, #tpu.memory_space<vmem>>, %arg5: memref<1x128xf32, #tpu.memory_space<vmem>>) attributes {dimension_semantics = [#tpu.dimension_semantics<parallel>], iteration_bounds = array<i64: 1>, scalar_prefetch = 0 : i64, scratch_operands = 0 : i64, tpu.core_type = #tpu.core_type<tc>, window_params = [{transform_indices = @transform_0, window_bounds = array<i64: 128, 16>}, {pipeline_mode = #tpu.pipeline_mode<synchronous>, transform_indices = @transform_1, window_bounds = array<i64: 128, 16>}, {pipeline_mode = #tpu.pipeline_mode<synchronous>, transform_indices = @transform_2, window_bounds = array<i64: 1, 128>}, {pipeline_mode = #tpu.pipeline_mode<synchronous>, transform_indices = @transform_3, window_bounds = array<i64: 1, 128>}, {transform_indices = @transform_4, window_bounds = array<i64: 1, 128>}]} {
    %c0 = arith.constant 0 : index
    %c0_0 = arith.constant 0 : index
    %0 = vector.load %arg1[%c0, %c0_0] : memref<128x16xf32, #tpu.memory_space<vmem>>, vector<128x16xf32>
    %c0_1 = arith.constant 0 : index
    %c0_2 = arith.constant 0 : index
    %1 = vector.load %arg2[%c0_1, %c0_2] : memref<128x16xf32, #tpu.memory_space<vmem>>, vector<128x16xf32>
    %c0_3 = arith.constant 0 : index
    %c0_4 = arith.constant 0 : index
    %2 = vector.load %arg3[%c0_3, %c0_4] : memref<1x128xf32, #tpu.memory_space<vmem>>, vector<1x128xf32>
    %c0_5 = arith.constant 0 : index
    %c0_6 = arith.constant 0 : index
    %3 = vector.load %arg4[%c0_5, %c0_6] : memref<1x128xf32, #tpu.memory_space<vmem>>, vector<1x128xf32>
    %cst = arith.constant dense<0.000000e+00> : vector<128x128xf32>
    %4 = tpu.matmul %0, %1, %cst {dimension_numbers = #tpu.dot_dimension_numbers<[1], [1], [0], [0], [0, 0, 1, 0], [], []>} : vector<128x16xf32>, vector<128x16xf32>, vector<128x128xf32> -> vector<128x128xf32>
    %5 = vector.broadcast %2 : vector<1x128xf32> to vector<128x128xf32>
    %6 = arith.subf %5, %4 : vector<128x128xf32>
    %7 = tpu.iota {dimensions = array<i32: 1>} : vector<128x128xi32>
    %8 = arith.sitofp %7 : vector<128x128xi32> to vector<128x128xf32>
    %cst_7 = arith.constant 0.000000e+00 : f32
    %9 = vector.broadcast %cst_7 : f32 to vector<128x128xf32>
    %cst_8 = arith.constant 1.280000e+02 : f32
    %cst_9 = arith.constant 3.000000e+38 : f32
    %c0_i32 = arith.constant 0 : i32
    %cst_10 = arith.constant dense<0x7F800000> : vector<128xf32>
    %10 = vector.multi_reduction <minimumf>, %6, %cst_10 [1] : vector<128x128xf32> to vector<128xf32>
    %11 = vector.shape_cast %10 : vector<128xf32> to vector<128x1xf32>
    %12 = vector.broadcast %11 : vector<128x1xf32> to vector<128x128xf32>
    %13 = arith.cmpf ole, %6, %12 : vector<128x128xf32>
    %14 = vector.broadcast %cst_8 : f32 to vector<128x128xf32>
    %15 = arith.select %13, %8, %14 : vector<128x128xi1>, vector<128x128xf32>
    %cst_11 = arith.constant dense<0x7F800000> : vector<128xf32>
    %16 = vector.multi_reduction <minimumf>, %15, %cst_11 [1] : vector<128x128xf32> to vector<128xf32>
    %17 = vector.shape_cast %16 : vector<128xf32> to vector<128x1xf32>
    %18 = vector.broadcast %17 : vector<128x1xf32> to vector<128x128xf32>
    %19 = arith.cmpf oeq, %8, %18 : vector<128x128xf32>
    %20 = arith.extui %19 : vector<128x128xi1> to vector<128x128xi32>
    %21 = arith.sitofp %20 : vector<128x128xi32> to vector<128x128xf32>
    %22 = arith.addf %9, %21 : vector<128x128xf32>
    %23 = vector.broadcast %cst_9 : f32 to vector<128x128xf32>
    %24 = arith.select %19, %23, %6 : vector<128x128xi1>, vector<128x128xf32>
    %c1_i32 = arith.constant 1 : i32
    %cst_12 = arith.constant dense<0x7F800000> : vector<128xf32>
    %25 = vector.multi_reduction <minimumf>, %24, %cst_12 [1] : vector<128x128xf32> to vector<128xf32>
    %26 = vector.shape_cast %25 : vector<128xf32> to vector<128x1xf32>
    %27 = vector.broadcast %26 : vector<128x1xf32> to vector<128x128xf32>
    %28 = arith.cmpf ole, %24, %27 : vector<128x128xf32>
    %29 = vector.broadcast %cst_8 : f32 to vector<128x128xf32>
    %30 = arith.select %28, %8, %29 : vector<128x128xi1>, vector<128x128xf32>
    %cst_13 = arith.constant dense<0x7F800000> : vector<128xf32>
    %31 = vector.multi_reduction <minimumf>, %30, %cst_13 [1] : vector<128x128xf32> to vector<128xf32>
    %32 = vector.shape_cast %31 : vector<128xf32> to vector<128x1xf32>
    %33 = vector.broadcast %32 : vector<128x1xf32> to vector<128x128xf32>
    %34 = arith.cmpf oeq, %8, %33 : vector<128x128xf32>
    %35 = arith.extui %34 : vector<128x128xi1> to vector<128x128xi32>
    %36 = arith.sitofp %35 : vector<128x128xi32> to vector<128x128xf32>
    %37 = arith.addf %22, %36 : vector<128x128xf32>
    %38 = vector.broadcast %cst_9 : f32 to vector<128x128xf32>
    %39 = arith.select %34, %38, %24 : vector<128x128xi1>, vector<128x128xf32>
    %c2_i32 = arith.constant 2 : i32
    %cst_14 = arith.constant dense<0x7F800000> : vector<128xf32>
    %40 = vector.multi_reduction <minimumf>, %39, %cst_14 [1] : vector<128x128xf32> to vector<128xf32>
    %41 = vector.shape_cast %40 : vector<128xf32> to vector<128x1xf32>
    %42 = vector.broadcast %41 : vector<128x1xf32> to vector<128x128xf32>
    %43 = arith.cmpf ole, %39, %42 : vector<128x128xf32>
    %44 = vector.broadcast %cst_8 : f32 to vector<128x128xf32>
    %45 = arith.select %43, %8, %44 : vector<128x128xi1>, vector<128x128xf32>
    %cst_15 = arith.constant dense<0x7F800000> : vector<128xf32>
    %46 = vector.multi_reduction <minimumf>, %45, %cst_15 [1] : vector<128x128xf32> to vector<128xf32>
    %47 = vector.shape_cast %46 : vector<128xf32> to vector<128x1xf32>
    %48 = vector.broadcast %47 : vector<128x1xf32> to vector<128x128xf32>
    %49 = arith.cmpf oeq, %8, %48 : vector<128x128xf32>
    %50 = arith.extui %49 : vector<128x128xi1> to vector<128x128xi32>
    %51 = arith.sitofp %50 : vector<128x128xi32> to vector<128x128xf32>
    %52 = arith.addf %37, %51 : vector<128x128xf32>
    %53 = vector.broadcast %cst_9 : f32 to vector<128x128xf32>
    %54 = arith.select %49, %53, %39 : vector<128x128xi1>, vector<128x128xf32>
    %c3_i32 = arith.constant 3 : i32
    %cst_16 = arith.constant dense<0x7F800000> : vector<128xf32>
    %55 = vector.multi_reduction <minimumf>, %54, %cst_16 [1] : vector<128x128xf32> to vector<128xf32>
    %56 = vector.shape_cast %55 : vector<128xf32> to vector<128x1xf32>
    %57 = vector.broadcast %56 : vector<128x1xf32> to vector<128x128xf32>
    %58 = arith.cmpf ole, %54, %57 : vector<128x128xf32>
    %59 = vector.broadcast %cst_8 : f32 to vector<128x128xf32>
    %60 = arith.select %58, %8, %59 : vector<128x128xi1>, vector<128x128xf32>
    %cst_17 = arith.constant dense<0x7F800000> : vector<128xf32>
    %61 = vector.multi_reduction <minimumf>, %60, %cst_17 [1] : vector<128x128xf32> to vector<128xf32>
    %62 = vector.shape_cast %61 : vector<128xf32> to vector<128x1xf32>
    %63 = vector.broadcast %62 : vector<128x1xf32> to vector<128x128xf32>
    %64 = arith.cmpf oeq, %8, %63 : vector<128x128xf32>
    %65 = arith.extui %64 : vector<128x128xi1> to vector<128x128xi32>
    %66 = arith.sitofp %65 : vector<128x128xi32> to vector<128x128xf32>
    %67 = arith.addf %52, %66 : vector<128x128xf32>
    %68 = vector.broadcast %cst_9 : f32 to vector<128x128xf32>
    %69 = arith.select %64, %68, %54 : vector<128x128xi1>, vector<128x128xf32>
    %c4_i32 = arith.constant 4 : i32
    %cst_18 = arith.constant dense<0x7F800000> : vector<128xf32>
    %70 = vector.multi_reduction <minimumf>, %69, %cst_18 [1] : vector<128x128xf32> to vector<128xf32>
    %71 = vector.shape_cast %70 : vector<128xf32> to vector<128x1xf32>
    %72 = vector.broadcast %71 : vector<128x1xf32> to vector<128x128xf32>
    %73 = arith.cmpf ole, %69, %72 : vector<128x128xf32>
    %74 = vector.broadcast %cst_8 : f32 to vector<128x128xf32>
    %75 = arith.select %73, %8, %74 : vector<128x128xi1>, vector<128x128xf32>
    %cst_19 = arith.constant dense<0x7F800000> : vector<128xf32>
    %76 = vector.multi_reduction <minimumf>, %75, %cst_19 [1] : vector<128x128xf32> to vector<128xf32>
    %77 = vector.shape_cast %76 : vector<128xf32> to vector<128x1xf32>
    %78 = vector.broadcast %77 : vector<128x1xf32> to vector<128x128xf32>
    %79 = arith.cmpf oeq, %8, %78 : vector<128x128xf32>
    %80 = arith.extui %79 : vector<128x128xi1> to vector<128x128xi32>
    %81 = arith.sitofp %80 : vector<128x128xi32> to vector<128x128xf32>
    %82 = arith.addf %67, %81 : vector<128x128xf32>
    %83 = vector.broadcast %cst_9 : f32 to vector<128x128xf32>
    %84 = arith.select %79, %83, %69 : vector<128x128xi1>, vector<128x128xf32>
    %cst_20 = arith.constant dense<0.000000e+00> : vector<1x128xf32>
    %85 = tpu.matmul %3, %82, %cst_20 {dimension_numbers = #tpu.dot_dimension_numbers<[1], [1], [0], [0], [0, 0, 1, 0], [], []>} : vector<1x128xf32>, vector<128x128xf32>, vector<1x128xf32> -> vector<1x128xf32>
    %c0_21 = arith.constant 0 : index
    %c0_22 = arith.constant 0 : index
    %86 = vector.load %arg5[%c0_21, %c0_22] : memref<1x128xf32, #tpu.memory_space<vmem>>, vector<1x128xf32>
    tpu.vector_store %arg5[%c0_21, %c0_22], %85 {strides = array<i32>} : memref<1x128xf32, #tpu.memory_space<vmem>>, vector<1x128xf32>,
    return
  }
  func.func @transform_0(%arg0: i32) -> (i32, i32) {
    %c0_i32 = arith.constant 0 : i32
    %c0_i32_0 = arith.constant 0 : i32
    return %arg0, %c0_i32 : i32, i32
  }
  func.func @transform_1(%arg0: i32) -> (i32, i32) {
    %c0_i32 = arith.constant 0 : i32
    %c0_i32_0 = arith.constant 0 : i32
    %c0_i32_1 = arith.constant 0 : i32
    return %c0_i32, %c0_i32_0 : i32, i32
  }
  func.func @transform_2(%arg0: i32) -> (i32, i32) {
    %c0_i32 = arith.constant 0 : i32
    %c0_i32_0 = arith.constant 0 : i32
    %c0_i32_1 = arith.constant 0 : i32
    return %c0_i32, %c0_i32_0 : i32, i32
  }
  func.func @transform_3(%arg0: i32) -> (i32, i32) {
    %c0_i32 = arith.constant 0 : i32
    %c0_i32_0 = arith.constant 0 : i32
    %c0_i32_1 = arith.constant 0 : i32
    return %c0_i32, %c0_i32_0 : i32, i32
  }
  func.func @transform_4(%arg0: i32) -> (i32, i32) {
    %c0_i32 = arith.constant 0 : i32
    %c0_i32_0 = arith.constant 0 : i32
    return %c0_i32, %arg0 : i32, i32
  }
}

</mosaic_0001>

<llo_original>
// kernel: tpu_custom_call.1
$region0: #{tpu_custom_call.1}
  #allocation0 [shape = 'u32[]', space=smem, size = 0x4, offset = 0x4, fixed_abs, tag = 'smem constant byte address 0x4 - core index']
  #allocation1 [shape = 'u32[144,128]{1,0:T(1,128)}', space=vmem, size = 0x12000, scoped, tag = 'internal scratch']
  %s0 = inlined_call_operand.vmem [shape: f32[128,16], index: 0, kind: input, shape index: {}]
  %s1 = inlined_call_operand.vmem [shape: f32[128,16], index: 1, kind: input, shape index: {}]
  %s2 = inlined_call_operand.vmem [shape: f32[1,128], index: 2, kind: input, shape index: {}]
  %s3 = inlined_call_operand.vmem [shape: f32[1,128], index: 3, kind: input, shape index: {}]
  %s4 = inlined_call_operand.hbm [shape: f32[1,128], index: 4, kind: output, shape index: {}]
  %s5 = sld [smem:[#allocation0]]
  $region26: #{tpu_custom_call.1} parent=0
    _
  %s7 = ssub.s32 1, %s5
  %s8 = scalar_select 0, %s7, %s5
  $region1: #{tpu_custom_call.1} parent=0
    #allocation2 [shape = 'u8[512]{0}', space=vmem, size = 0x400, scoped, tag = 'output window, operand 0, single buffered']
    #allocation3 [shape = 's32[1]{0}', space=sflag, size = 0x4, scoped, tag = 'scoped memory for tpu_custom_call.1']
    %9 = vsyncpa [#allocation3], 0
    // Predicated region
    $region2: #{tpu_custom_call.1} parent=1 // pred_check
      _
    $region3: #{tpu_custom_call.1} parent=1 // pred_check_branch
      %11 = sbr.rel (0) target = $region5
    $region4: #{tpu_custom_call.1} parent=1 // pred_region
      _
    $region5: #{tpu_custom_call.1} parent=1 // pred_fallthru
      _
    // Predicated region
    $region6: #{tpu_custom_call.1} parent=1 // pred_check
      _
    $region7: #{tpu_custom_call.1} parent=1 // pred_check_branch
      %13 = sbr.rel (0) target = $region9
    $region8: #{tpu_custom_call.1} parent=1 // pred_region
      _
    $region9: #{tpu_custom_call.1} parent=1 // pred_fallthru
      _
    // Predicated region
    $region10: #{tpu_custom_call.1} parent=1 // pred_check
      _
    $region11: #{tpu_custom_call.1} parent=1 // pred_check_branch
      %15 = sbr.rel (0) target = $region13
    $region12: #{tpu_custom_call.1} parent=1 // pred_region
      _
    $region13: #{tpu_custom_call.1} parent=1 // pred_fallthru
      _
    // Predicated region
    $region14: #{tpu_custom_call.1} parent=1 // pred_check
      _
    $region15: #{tpu_custom_call.1} parent=1 // pred_check_branch
      %17 = sbr.rel (0) target = $region17
    $region16: #{tpu_custom_call.1} parent=1 // pred_region
      _
    $region17: #{tpu_custom_call.1} parent=1 // pred_fallthru
      _
    %v18 = vld [vmem:[%s0] sm:$0xff]
    %v19 = vld [vmem:[%s0 + $0x8] sm:$0xff]
    %v20 = vld [vmem:[%s0 + $0x10] sm:$0xff]
    %v21 = vld [vmem:[%s0 + $0x18] sm:$0xff]
    %v22 = vld [vmem:[%s0 + $0x20] sm:$0xff]
    %v23 = vld [vmem:[%s0 + $0x28] sm:$0xff]
    %v24 = vld [vmem:[%s0 + $0x30] sm:$0xff]
    %v25 = vld [vmem:[%s0 + $0x38] sm:$0xff]
    %v26 = vld [vmem:[%s0 + $0x40] sm:$0xff]
    %v27 = vld [vmem:[%s0 + $0x48] sm:$0xff]
    %v28 = vld [vmem:[%s0 + $0x50] sm:$0xff]
    %v29 = vld [vmem:[%s0 + $0x58] sm:$0xff]
    %v30 = vld [vmem:[%s0 + $0x60] sm:$0xff]
    %v31 = vld [vmem:[%s0 + $0x68] sm:$0xff]
    %v32 = vld [vmem:[%s0 + $0x70] sm:$0xff]
    %v33 = vld [vmem:[%s0 + $0x78] sm:$0xff]
    %v34 = vld [vmem:[%s1] sm:$0xff]
    %v35 = vld [vmem:[%s1 + $0x8] sm:$0xff]
    %v36 = vld [vmem:[%s1 + $0x10] sm:$0xff]
    %v37 = vld [vmem:[%s1 + $0x18] sm:$0xff]
    %v38 = vld [vmem:[%s1 + $0x20] sm:$0xff]
    %v39 = vld [vmem:[%s1 + $0x28] sm:$0xff]
    %v40 = vld [vmem:[%s1 + $0x30] sm:$0xff]
    %v41 = vld [vmem:[%s1 + $0x38] sm:$0xff]
    %v42 = vld [vmem:[%s1 + $0x40] sm:$0xff]
    %v43 = vld [vmem:[%s1 + $0x48] sm:$0xff]
    %v44 = vld [vmem:[%s1 + $0x50] sm:$0xff]
    %v45 = vld [vmem:[%s1 + $0x58] sm:$0xff]
    %v46 = vld [vmem:[%s1 + $0x60] sm:$0xff]
    %v47 = vld [vmem:[%s1 + $0x68] sm:$0xff]
    %v48 = vld [vmem:[%s1 + $0x70] sm:$0xff]
    %v49 = vld [vmem:[%s1 + $0x78] sm:$0xff]
    %v50 = vld [vmem:[%s2] sm:$0x1]
    %v51 = vld [vmem:[%s3] sm:$0x1]
    %vm52 = vcmask 130048
    %v54 = vsel %vm52, %v18, 0
    %v57 = vsel %vm52, %v19, 0
    %v60 = vsel %vm52, %v20, 0
    %v63 = vsel %vm52, %v21, 0
    %v66 = vsel %vm52, %v22, 0
    %v69 = vsel %vm52, %v23, 0
    %v72 = vsel %vm52, %v24, 0
    %v75 = vsel %vm52, %v25, 0
    %v78 = vsel %vm52, %v26, 0
    %v81 = vsel %vm52, %v27, 0
    %v84 = vsel %vm52, %v28, 0
    %v87 = vsel %vm52, %v29, 0
    %v90 = vsel %vm52, %v30, 0
    %v93 = vsel %vm52, %v31, 0
    %v96 = vsel %vm52, %v32, 0
    %v99 = vsel %vm52, %v33, 0
    %v102 = vsel %vm52, %v34, 0
    %v105 = vsel %vm52, %v35, 0
    %v108 = vsel %vm52, %v36, 0
    %v111 = vsel %vm52, %v37, 0
    %v114 = vsel %vm52, %v38, 0
    %v117 = vsel %vm52, %v39, 0
    %v120 = vsel %vm52, %v40, 0
    %v123 = vsel %vm52, %v41, 0
    %v126 = vsel %vm52, %v42, 0
    %v129 = vsel %vm52, %v43, 0
    %v132 = vsel %vm52, %v44, 0
    %v135 = vsel %vm52, %v45, 0
    %v138 = vsel %vm52, %v46, 0
    %v141 = vsel %vm52, %v47, 0
    %v144 = vsel %vm52, %v48, 0
    %v147 = vsel %vm52, %v49, 0
    %149 = vmatprep.subr.mxu0 0.0
    %150 = vmatpush1.xpose.msra.mxu0 %v147
    %151 = vmatprep.subr.mxu0 0.0
    %152 = vmatpush1.xpose.msra.mxu0 %v144
    %153 = vmatprep.subr.mxu0 0.0
    %154 = vmatpush1.xpose.msra.mxu0 %v141
    %155 = vmatprep.subr.mxu0 0.0
    %156 = vmatpush1.xpose.msra.mxu0 %v138
    %157 = vmatprep.subr.mxu0 0.0
    %158 = vmatpush1.xpose.msra.mxu0 %v135
    %159 = vmatprep.subr.mxu0 0.0
    %160 = vmatpush1.xpose.msra.mxu0 %v132
    %161 = vmatprep.subr.mxu0 0.0
    %162 = vmatpush1.xpose.msra.mxu0 %v129
    %163 = vmatprep.subr.mxu0 0.0
    %164 = vmatpush1.xpose.msra.mxu0 %v126
    %165 = vmatprep.subr.mxu0 0.0
    %166 = vmatpush1.xpose.msra.mxu0 %v123
    %167 = vmatprep.subr.mxu0 0.0
    %168 = vmatpush1.xpose.msra.mxu0 %v120
    %169 = vmatprep.subr.mxu0 0.0
    %170 = vmatpush1.xpose.msra.mxu0 %v117
    %171 = vmatprep.subr.mxu0 0.0
    %172 = vmatpush1.xpose.msra.mxu0 %v114
    %173 = vmatprep.subr.mxu0 0.0
    %174 = vmatpush1.xpose.msra.mxu0 %v111
    %175 = vmatprep.subr.mxu0 0.0
    %176 = vmatpush1.xpose.msra.mxu0 %v108
    %177 = vmatprep.subr.mxu0 0.0
    %178 = vmatpush1.xpose.msra.mxu0 %v105
    %179 = vmatprep.subr.mxu0 0.0
    %180 = vmatpush1.xpose.msra.mxu0 %v102
    %181 = vmatprep.subr.mxu0 0.0
    %182 = vmatpush2.xpose.msra.mxu0 0.0
    %183 = vmatprep.subr.mxu0 0.0
    %184 = vmatpush2.xpose.msra.mxu0 0.0
    %185 = vmatprep.subr.mxu0 0.0
    %186 = vmatpush2.xpose.msra.mxu0 0.0
    %187 = vmatprep.subr.mxu0 0.0
    %188 = vmatpush2.xpose.msra.mxu0 0.0
    %189 = vmatprep.subr.mxu0 0.0
    %190 = vmatpush2.xpose.msra.mxu0 0.0
    %191 = vmatprep.subr.mxu0 0.0
    %192 = vmatpush2.xpose.msra.mxu0 0.0
    %193 = vmatprep.subr.mxu0 0.0
    %194 = vmatpush2.xpose.msra.mxu0 0.0
    %195 = vmatprep.subr.mxu0 0.0
    %196 = vmatpush2.xpose.msra.mxu0 0.0
    %197 = vmatprep.subr.mxu0 0.0
    %198 = vmatpush2.xpose.msra.mxu0 0.0
    %199 = vmatprep.subr.mxu0 0.0
    %200 = vmatpush2.xpose.msra.mxu0 0.0
    %201 = vmatprep.subr.mxu0 0.0
    %202 = vmatpush2.xpose.msra.mxu0 0.0
    %203 = vmatprep.subr.mxu0 0.0
    %204 = vmatpush2.xpose.msra.mxu0 0.0
    %205 = vmatprep.subr.mxu0 0.0
    %206 = vmatpush2.xpose.msra.mxu0 0.0
    %207 = vmatprep.subr.mxu0 0.0
    %208 = vmatpush2.xpose.msra.mxu0 0.0
    %209 = vmatprep.subr.mxu0 0.0
    %210 = vmatpush2.xpose.msra.mxu0 0.0
    %211 = vmatprep.subr.mxu0 0.0
    %212 = vmatpush2.xpose.msra.mxu0 0.0
    %213 = vmatprep.mubr.f32.mxu0 0.0
    %214 = vmatmul.mubr.f32.gmra.mxu0 %v54
    %v215 = vpop.f32.mrf.mxu0
    %v216 = vadd.f32 0.0, %v215
    %v217 = vpop.f32.mrf.mxu0
    %218 = vmatprep.mubr.f32.mxu0 0.0
    %219 = vmatmul.mubr.f32.gmra.mxu0 %v57
    %v220 = vpop.f32.mrf.mxu0
    %v221 = vadd.f32 0.0, %v220
    %v222 = vpop.f32.mrf.mxu0
    %223 = vmatprep.mubr.f32.mxu0 0.0
    %224 = vmatmul.mubr.f32.gmra.mxu0 %v60
    %v225 = vpop.f32.mrf.mxu0
    %v226 = vadd.f32 0.0, %v225
    %v227 = vpop.f32.mrf.mxu0
    %228 = vmatprep.mubr.f32.mxu0 0.0
    %229 = vmatmul.mubr.f32.gmra.mxu0 %v63
    %v230 = vpop.f32.mrf.mxu0
    %v231 = vadd.f32 0.0, %v230
    %v232 = vpop.f32.mrf.mxu0
    %233 = vmatprep.mubr.f32.mxu0 0.0
    %234 = vmatmul.mubr.f32.gmra.mxu0 %v66
    %v235 = vpop.f32.mrf.mxu0
    %v236 = vadd.f32 0.0, %v235
    %v237 = vpop.f32.mrf.mxu0
    %238 = vmatprep.mubr.f32.mxu0 0.0
    %239 = vmatmul.mubr.f32.gmra.mxu0 %v69
    %v240 = vpop.f32.mrf.mxu0
    %v241 = vadd.f32 0.0, %v240
    %v242 = vpop.f32.mrf.mxu0
    %243 = vmatprep.mubr.f32.mxu0 0.0
    %244 = vmatmul.mubr.f32.gmra.mxu0 %v72
    %v245 = vpop.f32.mrf.mxu0
    %v246 = vadd.f32 0.0, %v245
    %v247 = vpop.f32.mrf.mxu0
    %248 = vmatprep.mubr.f32.mxu0 0.0
    %249 = vmatmul.mubr.f32.gmra.mxu0 %v75
    %v250 = vpop.f32.mrf.mxu0
    %v251 = vadd.f32 0.0, %v250
    %v252 = vpop.f32.mrf.mxu0
    %253 = vmatprep.mubr.f32.mxu0 0.0
    %254 = vmatmul.mubr.f32.gmra.mxu0 %v78
    %v255 = vpop.f32.mrf.mxu0
    %v256 = vadd.f32 0.0, %v255
    %v257 = vpop.f32.mrf.mxu0
    %258 = vmatprep.mubr.f32.mxu0 0.0
    %259 = vmatmul.mubr.f32.gmra.mxu0 %v81
    %v260 = vpop.f32.mrf.mxu0
    %v261 = vadd.f32 0.0, %v260
    %v262 = vpop.f32.mrf.mxu0
    %263 = vmatprep.mubr.f32.mxu0 0.0
    %264 = vmatmul.mubr.f32.gmra.mxu0 %v84
    %v265 = vpop.f32.mrf.mxu0
    %v266 = vadd.f32 0.0, %v265
    %v267 = vpop.f32.mrf.mxu0
    %268 = vmatprep.mubr.f32.mxu0 0.0
    %269 = vmatmul.mubr.f32.gmra.mxu0 %v87
    %v270 = vpop.f32.mrf.mxu0
    %v271 = vadd.f32 0.0, %v270
    %v272 = vpop.f32.mrf.mxu0
    %273 = vmatprep.mubr.f32.mxu0 0.0
    %274 = vmatmul.mubr.f32.gmra.mxu0 %v90
    %v275 = vpop.f32.mrf.mxu0
    %v276 = vadd.f32 0.0, %v275
    %v277 = vpop.f32.mrf.mxu0
    %278 = vmatprep.mubr.f32.mxu0 0.0
    %279 = vmatmul.mubr.f32.gmra.mxu0 %v93
    %v280 = vpop.f32.mrf.mxu0
    %v281 = vadd.f32 0.0, %v280
    %v282 = vpop.f32.mrf.mxu0
    %283 = vmatprep.mubr.f32.mxu0 0.0
    %284 = vmatmul.mubr.f32.gmra.mxu0 %v96
    %v285 = vpop.f32.mrf.mxu0
    %v286 = vadd.f32 0.0, %v285
    %v287 = vpop.f32.mrf.mxu0
    %288 = vmatprep.mubr.f32.mxu0 0.0
    %289 = vmatmul.mubr.f32.gmra.mxu0 %v99
    %v290 = vpop.f32.mrf.mxu0
    %v291 = vadd.f32 0.0, %v290
    %v292 = vpop.f32.mrf.mxu0
    %293 = vdwg.mxu0
    %v295 = vlaneseq
    %v296 = vshrl.u32 %v295, 7
    %v297 = vsub.s32 0, %v296
    %v298 = vrot.slane %v50, %v297
    %v300 = vsub.f32 %v298, %v216
    %v301 = vsub.f32 %v298, %v221
    %v302 = vsub.f32 %v298, %v226
    %v303 = vsub.f32 %v298, %v231
    %v304 = vsub.f32 %v298, %v236
    %v305 = vsub.f32 %v298, %v241
    %v306 = vsub.f32 %v298, %v246
    %v307 = vsub.f32 %v298, %v251
    %v308 = vsub.f32 %v298, %v256
    %v309 = vsub.f32 %v298, %v261
    %v310 = vsub.f32 %v298, %v266
    %v311 = vsub.f32 %v298, %v271
    %v312 = vsub.f32 %v298, %v276
    %v313 = vsub.f32 %v298, %v281
    %v314 = vsub.f32 %v298, %v286
    %v315 = vsub.f32 %v298, %v291
    %v316 = vlaneseq
    %v317 = vand.u32 %v316, 127
    %v318 = vcvt.s32.f32 %v317
    %319 = vmin.xlane.f32.xlu0 %v300
    %v320 = vpop.xlane.xlu0 %319
    %321 = vmin.xlane.f32.xlu0 %v301
    %v322 = vpop.xlane.xlu0 %321
    %323 = vmin.xlane.f32.xlu0 %v302
    %v324 = vpop.xlane.xlu0 %323
    %325 = vmin.xlane.f32.xlu0 %v303
    %v326 = vpop.xlane.xlu0 %325
    %327 = vmin.xlane.f32.xlu0 %v304
    %v328 = vpop.xlane.xlu0 %327
    %329 = vmin.xlane.f32.xlu0 %v305
    %v330 = vpop.xlane.xlu0 %329
    %331 = vmin.xlane.f32.xlu0 %v306
    %v332 = vpop.xlane.xlu0 %331
    %333 = vmin.xlane.f32.xlu0 %v307
    %v334 = vpop.xlane.xlu0 %333
    %335 = vmin.xlane.f32.xlu0 %v308
    %v336 = vpop.xlane.xlu0 %335
    %337 = vmin.xlane.f32.xlu0 %v309
    %v338 = vpop.xlane.xlu0 %337
    %339 = vmin.xlane.f32.xlu0 %v310
    %v340 = vpop.xlane.xlu0 %339
    %341 = vmin.xlane.f32.xlu0 %v311
    %v342 = vpop.xlane.xlu0 %341
    %343 = vmin.xlane.f32.xlu0 %v312
    %v344 = vpop.xlane.xlu0 %343
    %345 = vmin.xlane.f32.xlu0 %v313
    %v346 = vpop.xlane.xlu0 %345
    %347 = vmin.xlane.f32.xlu0 %v314
    %v348 = vpop.xlane.xlu0 %347
    %349 = vmin.xlane.f32.xlu0 %v315
    %v350 = vpop.xlane.xlu0 %349
    %vm351 = vcmp.le.f32.partialorder %v300, %v320
    %vm352 = vcmp.le.f32.partialorder %v301, %v322
    %vm353 = vcmp.le.f32.partialorder %v302, %v324
    %vm354 = vcmp.le.f32.partialorder %v303, %v326
    %vm355 = vcmp.le.f32.partialorder %v304, %v328
    %vm356 = vcmp.le.f32.partialorder %v305, %v330
    %vm357 = vcmp.le.f32.partialorder %v306, %v332
    %vm358 = vcmp.le.f32.partialorder %v307, %v334
    %vm359 = vcmp.le.f32.partialorder %v308, %v336
    %vm360 = vcmp.le.f32.partialorder %v309, %v338
    %vm361 = vcmp.le.f32.partialorder %v310, %v340
    %vm362 = vcmp.le.f32.partialorder %v311, %v342
    %vm363 = vcmp.le.f32.partialorder %v312, %v344
    %vm364 = vcmp.le.f32.partialorder %v313, %v346
    %vm365 = vcmp.le.f32.partialorder %v314, %v348
    %vm366 = vcmp.le.f32.partialorder %v315, %v350
    %v367 = vsel %vm351, %v318, 128.0
    %v368 = vsel %vm352, %v318, 128.0
    %v369 = vsel %vm353, %v318, 128.0
    %v370 = vsel %vm354, %v318, 128.0
    %v371 = vsel %vm355, %v318, 128.0
    %v372 = vsel %vm356, %v318, 128.0
    %v373 = vsel %vm357, %v318, 128.0
    %v374 = vsel %vm358, %v318, 128.0
    %v375 = vsel %vm359, %v318, 128.0
    %v376 = vsel %vm360, %v318, 128.0
    %v377 = vsel %vm361, %v318, 128.0
    %v378 = vsel %vm362, %v318, 128.0
    %v379 = vsel %vm363, %v318, 128.0
    %v380 = vsel %vm364, %v318, 128.0
    %v381 = vsel %vm365, %v318, 128.0
    %v382 = vsel %vm366, %v318, 128.0
    %383 = vmin.xlane.f32.xlu0 %v367
    %v384 = vpop.xlane.xlu0 %383
    %385 = vmin.xlane.f32.xlu0 %v368
    %v386 = vpop.xlane.xlu0 %385
    %387 = vmin.xlane.f32.xlu0 %v369
    %v388 = vpop.xlane.xlu0 %387
    %389 = vmin.xlane.f32.xlu0 %v370
    %v390 = vpop.xlane.xlu0 %389
    %391 = vmin.xlane.f32.xlu0 %v371
    %v392 = vpop.xlane.xlu0 %391
    %393 = vmin.xlane.f32.xlu0 %v372
    %v394 = vpop.xlane.xlu0 %393
    %395 = vmin.xlane.f32.xlu0 %v373
    %v396 = vpop.xlane.xlu0 %395
    %397 = vmin.xlane.f32.xlu0 %v374
    %v398 = vpop.xlane.xlu0 %397
    %399 = vmin.xlane.f32.xlu0 %v375
    %v400 = vpop.xlane.xlu0 %399
    %401 = vmin.xlane.f32.xlu0 %v376
    %v402 = vpop.xlane.xlu0 %401
    %403 = vmin.xlane.f32.xlu0 %v377
    %v404 = vpop.xlane.xlu0 %403
    %405 = vmin.xlane.f32.xlu0 %v378
    %v406 = vpop.xlane.xlu0 %405
    %407 = vmin.xlane.f32.xlu0 %v379
    %v408 = vpop.xlane.xlu0 %407
    %409 = vmin.xlane.f32.xlu0 %v380
    %v410 = vpop.xlane.xlu0 %409
    %411 = vmin.xlane.f32.xlu0 %v381
    %v412 = vpop.xlane.xlu0 %411
    %413 = vmin.xlane.f32.xlu0 %v382
    %v414 = vpop.xlane.xlu0 %413
    %vm415 = vcmp.eq.f32.partialorder %v318, %v384
    %vm416 = vcmp.eq.f32.partialorder %v318, %v386
    %vm417 = vcmp.eq.f32.partialorder %v318, %v388
    %vm418 = vcmp.eq.f32.partialorder %v318, %v390
    %vm419 = vcmp.eq.f32.partialorder %v318, %v392
    %vm420 = vcmp.eq.f32.partialorder %v318, %v394
    %vm421 = vcmp.eq.f32.partialorder %v318, %v396
    %vm422 = vcmp.eq.f32.partialorder %v318, %v398
    %vm423 = vcmp.eq.f32.partialorder %v318, %v400
    %vm424 = vcmp.eq.f32.partialorder %v318, %v402
    %vm425 = vcmp.eq.f32.partialorder %v318, %v404
    %vm426 = vcmp.eq.f32.partialorder %v318, %v406
    %vm427 = vcmp.eq.f32.partialorder %v318, %v408
    %vm428 = vcmp.eq.f32.partialorder %v318, %v410
    %vm429 = vcmp.eq.f32.partialorder %v318, %v412
    %vm430 = vcmp.eq.f32.partialorder %v318, %v414
    %v431 = vsel %vm415, 1, 0
    %v432 = vsel %vm416, 1, 0
    %v433 = vsel %vm417, 1, 0
    %v434 = vsel %vm418, 1, 0
    %v435 = vsel %vm419, 1, 0
    %v436 = vsel %vm420, 1, 0
    %v437 = vsel %vm421, 1, 0
    %v438 = vsel %vm422, 1, 0
    %v439 = vsel %vm423, 1, 0
    %v440 = vsel %vm424, 1, 0
    %v441 = vsel %vm425, 1, 0
    %v442 = vsel %vm426, 1, 0
    %v443 = vsel %vm427, 1, 0
    %v444 = vsel %vm428, 1, 0
    %v445 = vsel %vm429, 1, 0
    %v446 = vsel %vm430, 1, 0
    %v447 = vcvt.s32.f32 %v431
    %v448 = vcvt.s32.f32 %v432
    %v449 = vcvt.s32.f32 %v433
    %v450 = vcvt.s32.f32 %v434
    %v451 = vcvt.s32.f32 %v435
    %v452 = vcvt.s32.f32 %v436
    %v453 = vcvt.s32.f32 %v437
    %v454 = vcvt.s32.f32 %v438
    %v455 = vcvt.s32.f32 %v439
    %v456 = vcvt.s32.f32 %v440
    %v457 = vcvt.s32.f32 %v441
    %v458 = vcvt.s32.f32 %v442
    %v459 = vcvt.s32.f32 %v443
    %v460 = vcvt.s32.f32 %v444
    %v461 = vcvt.s32.f32 %v445
    %v462 = vcvt.s32.f32 %v446
    %v463 = vadd.f32 %v447, 0.0
    %v464 = vadd.f32 %v448, 0.0
    %v465 = vadd.f32 %v449, 0.0
    %v466 = vadd.f32 %v450, 0.0
    %v467 = vadd.f32 %v451, 0.0
    %v468 = vadd.f32 %v452, 0.0
    %v469 = vadd.f32 %v453, 0.0
    %v470 = vadd.f32 %v454, 0.0
    %v471 = vadd.f32 %v455, 0.0
    %v472 = vadd.f32 %v456, 0.0
    %v473 = vadd.f32 %v457, 0.0
    %v474 = vadd.f32 %v458, 0.0
    %v475 = vadd.f32 %v459, 0.0
    %v476 = vadd.f32 %v460, 0.0
    %v477 = vadd.f32 %v461, 0.0
    %v478 = vadd.f32 %v462, 0.0
    %v479 = vsel %vm415, 3e+38, %v300
    %v480 = vsel %vm416, 3e+38, %v301
    %v481 = vsel %vm417, 3e+38, %v302
    %v482 = vsel %vm418, 3e+38, %v303
    %v483 = vsel %vm419, 3e+38, %v304
    %v484 = vsel %vm420, 3e+38, %v305
    %v485 = vsel %vm421, 3e+38, %v306
    %v486 = vsel %vm422, 3e+38, %v307
    %v487 = vsel %vm423, 3e+38, %v308
    %v488 = vsel %vm424, 3e+38, %v309
    %v489 = vsel %vm425, 3e+38, %v310
    %v490 = vsel %vm426, 3e+38, %v311
    %v491 = vsel %vm427, 3e+38, %v312
    %v492 = vsel %vm428, 3e+38, %v313
    %v493 = vsel %vm429, 3e+38, %v314
    %v494 = vsel %vm430, 3e+38, %v315
    %495 = vmin.xlane.f32.xlu0 %v479
    %v496 = vpop.xlane.xlu0 %495
    %497 = vmin.xlane.f32.xlu0 %v480
    %v498 = vpop.xlane.xlu0 %497
    %499 = vmin.xlane.f32.xlu0 %v481
    %v500 = vpop.xlane.xlu0 %499
    %501 = vmin.xlane.f32.xlu0 %v482
    %v502 = vpop.xlane.xlu0 %501
    %503 = vmin.xlane.f32.xlu0 %v483
    %v504 = vpop.xlane.xlu0 %503
    %505 = vmin.xlane.f32.xlu0 %v484
    %v506 = vpop.xlane.xlu0 %505
    %507 = vmin.xlane.f32.xlu0 %v485
    %v508 = vpop.xlane.xlu0 %507
    %509 = vmin.xlane.f32.xlu0 %v486
    %v510 = vpop.xlane.xlu0 %509
    %511 = vmin.xlane.f32.xlu0 %v487
    %v512 = vpop.xlane.xlu0 %511
    %513 = vmin.xlane.f32.xlu0 %v488
    %v514 = vpop.xlane.xlu0 %513
    %515 = vmin.xlane.f32.xlu0 %v489
    %v516 = vpop.xlane.xlu0 %515
    %517 = vmin.xlane.f32.xlu0 %v490
    %v518 = vpop.xlane.xlu0 %517
    %519 = vmin.xlane.f32.xlu0 %v491
    %v520 = vpop.xlane.xlu0 %519
    %521 = vmin.xlane.f32.xlu0 %v492
    %v522 = vpop.xlane.xlu0 %521
    %523 = vmin.xlane.f32.xlu0 %v493
    %v524 = vpop.xlane.xlu0 %523
    %525 = vmin.xlane.f32.xlu0 %v494
    %v526 = vpop.xlane.xlu0 %525
    %vm527 = vcmp.le.f32.partialorder %v479, %v496
    %vm528 = vcmp.le.f32.partialorder %v480, %v498
    %vm529 = vcmp.le.f32.partialorder %v481, %v500
    %vm530 = vcmp.le.f32.partialorder %v482, %v502
    %vm531 = vcmp.le.f32.partialorder %v483, %v504
    %vm532 = vcmp.le.f32.partialorder %v484, %v506
    %vm533 = vcmp.le.f32.partialorder %v485, %v508
    %vm534 = vcmp.le.f32.partialorder %v486, %v510
    %vm535 = vcmp.le.f32.partialorder %v487, %v512
    %vm536 = vcmp.le.f32.partialorder %v488, %v514
    %vm537 = vcmp.le.f32.partialorder %v489, %v516
    %vm538 = vcmp.le.f32.partialorder %v490, %v518
    %vm539 = vcmp.le.f32.partialorder %v491, %v520
    %vm540 = vcmp.le.f32.partialorder %v492, %v522
    %vm541 = vcmp.le.f32.partialorder %v493, %v524
    %vm542 = vcmp.le.f32.partialorder %v494, %v526
    %v543 = vsel %vm527, %v318, 128.0
    %v544 = vsel %vm528, %v318, 128.0
    %v545 = vsel %vm529, %v318, 128.0
    %v546 = vsel %vm530, %v318, 128.0
    %v547 = vsel %vm531, %v318, 128.0
    %v548 = vsel %vm532, %v318, 128.0
    %v549 = vsel %vm533, %v318, 128.0
    %v550 = vsel %vm534, %v318, 128.0
    %v551 = vsel %vm535, %v318, 128.0
    %v552 = vsel %vm536, %v318, 128.0
    %v553 = vsel %vm537, %v318, 128.0
    %v554 = vsel %vm538, %v318, 128.0
    %v555 = vsel %vm539, %v318, 128.0
    %v556 = vsel %vm540, %v318, 128.0
    %v557 = vsel %vm541, %v318, 128.0
    %v558 = vsel %vm542, %v318, 128.0
    %559 = vmin.xlane.f32.xlu0 %v543
    %v560 = vpop.xlane.xlu0 %559
    %561 = vmin.xlane.f32.xlu0 %v544
    %v562 = vpop.xlane.xlu0 %561
    %563 = vmin.xlane.f32.xlu0 %v545
    %v564 = vpop.xlane.xlu0 %563
    %565 = vmin.xlane.f32.xlu0 %v546
    %v566 = vpop.xlane.xlu0 %565
    %567 = vmin.xlane.f32.xlu0 %v547
    %v568 = vpop.xlane.xlu0 %567
    %569 = vmin.xlane.f32.xlu0 %v548
    %v570 = vpop.xlane.xlu0 %569
    %571 = vmin.xlane.f32.xlu0 %v549
    %v572 = vpop.xlane.xlu0 %571
    %573 = vmin.xlane.f32.xlu0 %v550
    %v574 = vpop.xlane.xlu0 %573
    %575 = vmin.xlane.f32.xlu0 %v551
    %v576 = vpop.xlane.xlu0 %575
    %577 = vmin.xlane.f32.xlu0 %v552
    %v578 = vpop.xlane.xlu0 %577
    %579 = vmin.xlane.f32.xlu0 %v553
    %v580 = vpop.xlane.xlu0 %579
    %581 = vmin.xlane.f32.xlu0 %v554
    %v582 = vpop.xlane.xlu0 %581
    %583 = vmin.xlane.f32.xlu0 %v555
    %v584 = vpop.xlane.xlu0 %583
    %585 = vmin.xlane.f32.xlu0 %v556
    %v586 = vpop.xlane.xlu0 %585
    %587 = vmin.xlane.f32.xlu0 %v557
    %v588 = vpop.xlane.xlu0 %587
    %589 = vmin.xlane.f32.xlu0 %v558
    %v590 = vpop.xlane.xlu0 %589
    %vm591 = vcmp.eq.f32.partialorder %v318, %v560
    %vm592 = vcmp.eq.f32.partialorder %v318, %v562
    %vm593 = vcmp.eq.f32.partialorder %v318, %v564
    %vm594 = vcmp.eq.f32.partialorder %v318, %v566
    %vm595 = vcmp.eq.f32.partialorder %v318, %v568
    %vm596 = vcmp.eq.f32.partialorder %v318, %v570
    %vm597 = vcmp.eq.f32.partialorder %v318, %v572
    %vm598 = vcmp.eq.f32.partialorder %v318, %v574
    %vm599 = vcmp.eq.f32.partialorder %v318, %v576
    %vm600 = vcmp.eq.f32.partialorder %v318, %v578
    %vm601 = vcmp.eq.f32.partialorder %v318, %v580
    %vm602 = vcmp.eq.f32.partialorder %v318, %v582
    %vm603 = vcmp.eq.f32.partialorder %v318, %v584
    %vm604 = vcmp.eq.f32.partialorder %v318, %v586
    %vm605 = vcmp.eq.f32.partialorder %v318, %v588
    %vm606 = vcmp.eq.f32.partialorder %v318, %v590
    %v607 = vsel %vm591, 1, 0
    %v608 = vsel %vm592, 1, 0
    %v609 = vsel %vm593, 1, 0
    %v610 = vsel %vm594, 1, 0
    %v611 = vsel %vm595, 1, 0
    %v612 = vsel %vm596, 1, 0
    %v613 = vsel %vm597, 1, 0
    %v614 = vsel %vm598, 1, 0
    %v615 = vsel %vm599, 1, 0
    %v616 = vsel %vm600, 1, 0
    %v617 = vsel %vm601, 1, 0
    %v618 = vsel %vm602, 1, 0
    %v619 = vsel %vm603, 1, 0
    %v620 = vsel %vm604, 1, 0
    %v621 = vsel %vm605, 1, 0
    %v622 = vsel %vm606, 1, 0
    %v623 = vcvt.s32.f32 %v607
    %v624 = vcvt.s32.f32 %v608
    %v625 = vcvt.s32.f32 %v609
    %v626 = vcvt.s32.f32 %v610
    %v627 = vcvt.s32.f32 %v611
    %v628 = vcvt.s32.f32 %v612
    %v629 = vcvt.s32.f32 %v613
    %v630 = vcvt.s32.f32 %v614
    %v631 = vcvt.s32.f32 %v615
    %v632 = vcvt.s32.f32 %v616
    %v633 = vcvt.s32.f32 %v617
    %v634 = vcvt.s32.f32 %v618
    %v635 = vcvt.s32.f32 %v619
    %v636 = vcvt.s32.f32 %v620
    %v637 = vcvt.s32.f32 %v621
    %v638 = vcvt.s32.f32 %v622
    %v639 = vadd.f32 %v463, %v623
    %v640 = vadd.f32 %v464, %v624
    %v641 = vadd.f32 %v465, %v625
    %v642 = vadd.f32 %v466, %v626
    %v643 = vadd.f32 %v467, %v627
    %v644 = vadd.f32 %v468, %v628
    %v645 = vadd.f32 %v469, %v629
    %v646 = vadd.f32 %v470, %v630
    %v647 = vadd.f32 %v471, %v631
    %v648 = vadd.f32 %v472, %v632
    %v649 = vadd.f32 %v473, %v633
    %v650 = vadd.f32 %v474, %v634
    %v651 = vadd.f32 %v475, %v635
    %v652 = vadd.f32 %v476, %v636
    %v653 = vadd.f32 %v477, %v637
    %v654 = vadd.f32 %v478, %v638
    %v655 = vsel %vm591, 3e+38, %v479
    %v656 = vsel %vm592, 3e+38, %v480
    %v657 = vsel %vm593, 3e+38, %v481
    %v658 = vsel %vm594, 3e+38, %v482
    %v659 = vsel %vm595, 3e+38, %v483
    %v660 = vsel %vm596, 3e+38, %v484
    %v661 = vsel %vm597, 3e+38, %v485
    %v662 = vsel %vm598, 3e+38, %v486
    %v663 = vsel %vm599, 3e+38, %v487
    %v664 = vsel %vm600, 3e+38, %v488
    %v665 = vsel %vm601, 3e+38, %v489
    %v666 = vsel %vm602, 3e+38, %v490
    %v667 = vsel %vm603, 3e+38, %v491
    %v668 = vsel %vm604, 3e+38, %v492
    %v669 = vsel %vm605, 3e+38, %v493
    %v670 = vsel %vm606, 3e+38, %v494
    %671 = vmin.xlane.f32.xlu0 %v655
    %v672 = vpop.xlane.xlu0 %671
    %673 = vmin.xlane.f32.xlu0 %v656
    %v674 = vpop.xlane.xlu0 %673
    %675 = vmin.xlane.f32.xlu0 %v657
    %v676 = vpop.xlane.xlu0 %675
    %677 = vmin.xlane.f32.xlu0 %v658
    %v678 = vpop.xlane.xlu0 %677
    %679 = vmin.xlane.f32.xlu0 %v659
    %v680 = vpop.xlane.xlu0 %679
    %681 = vmin.xlane.f32.xlu0 %v660
    %v682 = vpop.xlane.xlu0 %681
    %683 = vmin.xlane.f32.xlu0 %v661
    %v684 = vpop.xlane.xlu0 %683
    %685 = vmin.xlane.f32.xlu0 %v662
    %v686 = vpop.xlane.xlu0 %685
    %687 = vmin.xlane.f32.xlu0 %v663
    %v688 = vpop.xlane.xlu0 %687
    %689 = vmin.xlane.f32.xlu0 %v664
    %v690 = vpop.xlane.xlu0 %689
    %691 = vmin.xlane.f32.xlu0 %v665
    %v692 = vpop.xlane.xlu0 %691
    %693 = vmin.xlane.f32.xlu0 %v666
    %v694 = vpop.xlane.xlu0 %693
    %695 = vmin.xlane.f32.xlu0 %v667
    %v696 = vpop.xlane.xlu0 %695
    %697 = vmin.xlane.f32.xlu0 %v668
    %v698 = vpop.xlane.xlu0 %697
    %699 = vmin.xlane.f32.xlu0 %v669
    %v700 = vpop.xlane.xlu0 %699
    %701 = vmin.xlane.f32.xlu0 %v670
    %v702 = vpop.xlane.xlu0 %701
    %vm703 = vcmp.le.f32.partialorder %v655, %v672
    %vm704 = vcmp.le.f32.partialorder %v656, %v674
    %vm705 = vcmp.le.f32.partialorder %v657, %v676
    %vm706 = vcmp.le.f32.partialorder %v658, %v678
    %vm707 = vcmp.le.f32.partialorder %v659, %v680
    %vm708 = vcmp.le.f32.partialorder %v660, %v682
    %vm709 = vcmp.le.f32.partialorder %v661, %v684
    %vm710 = vcmp.le.f32.partialorder %v662, %v686
    %vm711 = vcmp.le.f32.partialorder %v663, %v688
    %vm712 = vcmp.le.f32.partialorder %v664, %v690
    %vm713 = vcmp.le.f32.partialorder %v665, %v692
    %vm714 = vcmp.le.f32.partialorder %v666, %v694
    %vm715 = vcmp.le.f32.partialorder %v667, %v696
    %vm716 = vcmp.le.f32.partialorder %v668, %v698
    %vm717 = vcmp.le.f32.partialorder %v669, %v700
    %vm718 = vcmp.le.f32.partialorder %v670, %v702
    %v719 = vsel %vm703, %v318, 128.0
    %v720 = vsel %vm704, %v318, 128.0
    %v721 = vsel %vm705, %v318, 128.0
    %v722 = vsel %vm706, %v318, 128.0
    %v723 = vsel %vm707, %v318, 128.0
    %v724 = vsel %vm708, %v318, 128.0
    %v725 = vsel %vm709, %v318, 128.0
    %v726 = vsel %vm710, %v318, 128.0
    %v727 = vsel %vm711, %v318, 128.0
    %v728 = vsel %vm712, %v318, 128.0
    %v729 = vsel %vm713, %v318, 128.0
    %v730 = vsel %vm714, %v318, 128.0
    %v731 = vsel %vm715, %v318, 128.0
    %v732 = vsel %vm716, %v318, 128.0
    %v733 = vsel %vm717, %v318, 128.0
    %v734 = vsel %vm718, %v318, 128.0
    %735 = vmin.xlane.f32.xlu0 %v719
    %v736 = vpop.xlane.xlu0 %735
    %737 = vmin.xlane.f32.xlu0 %v720
    %v738 = vpop.xlane.xlu0 %737
    %739 = vmin.xlane.f32.xlu0 %v721
    %v740 = vpop.xlane.xlu0 %739
    %741 = vmin.xlane.f32.xlu0 %v722
    %v742 = vpop.xlane.xlu0 %741
    %743 = vmin.xlane.f32.xlu0 %v723
    %v744 = vpop.xlane.xlu0 %743
    %745 = vmin.xlane.f32.xlu0 %v724
    %v746 = vpop.xlane.xlu0 %745
    %747 = vmin.xlane.f32.xlu0 %v725
    %v748 = vpop.xlane.xlu0 %747
    %749 = vmin.xlane.f32.xlu0 %v726
    %v750 = vpop.xlane.xlu0 %749
    %751 = vmin.xlane.f32.xlu0 %v727
    %v752 = vpop.xlane.xlu0 %751
    %753 = vmin.xlane.f32.xlu0 %v728
    %v754 = vpop.xlane.xlu0 %753
    %755 = vmin.xlane.f32.xlu0 %v729
    %v756 = vpop.xlane.xlu0 %755
    %757 = vmin.xlane.f32.xlu0 %v730
    %v758 = vpop.xlane.xlu0 %757
    %759 = vmin.xlane.f32.xlu0 %v731
    %v760 = vpop.xlane.xlu0 %759
    %761 = vmin.xlane.f32.xlu0 %v732
    %v762 = vpop.xlane.xlu0 %761
    %763 = vmin.xlane.f32.xlu0 %v733
    %v764 = vpop.xlane.xlu0 %763
    %765 = vmin.xlane.f32.xlu0 %v734
    %v766 = vpop.xlane.xlu0 %765
    %vm767 = vcmp.eq.f32.partialorder %v318, %v736
    %vm768 = vcmp.eq.f32.partialorder %v318, %v738
    %vm769 = vcmp.eq.f32.partialorder %v318, %v740
    %vm770 = vcmp.eq.f32.partialorder %v318, %v742
    %vm771 = vcmp.eq.f32.partialorder %v318, %v744
    %vm772 = vcmp.eq.f32.partialorder %v318, %v746
    %vm773 = vcmp.eq.f32.partialorder %v318, %v748
    %vm774 = vcmp.eq.f32.partialorder %v318, %v750
    %vm775 = vcmp.eq.f32.partialorder %v318, %v752
    %vm776 = vcmp.eq.f32.partialorder %v318, %v754
    %vm777 = vcmp.eq.f32.partialorder %v318, %v756
    %vm778 = vcmp.eq.f32.partialorder %v318, %v758
    %vm779 = vcmp.eq.f32.partialorder %v318, %v760
    %vm780 = vcmp.eq.f32.partialorder %v318, %v762
    %vm781 = vcmp.eq.f32.partialorder %v318, %v764
    %vm782 = vcmp.eq.f32.partialorder %v318, %v766
    %v783 = vsel %vm767, 1, 0
    %v784 = vsel %vm768, 1, 0
    %v785 = vsel %vm769, 1, 0
    %v786 = vsel %vm770, 1, 0
    %v787 = vsel %vm771, 1, 0
    %v788 = vsel %vm772, 1, 0
    %v789 = vsel %vm773, 1, 0
    %v790 = vsel %vm774, 1, 0
    %v791 = vsel %vm775, 1, 0
    %v792 = vsel %vm776, 1, 0
    %v793 = vsel %vm777, 1, 0
    %v794 = vsel %vm778, 1, 0
    %v795 = vsel %vm779, 1, 0
    %v796 = vsel %vm780, 1, 0
    %v797 = vsel %vm781, 1, 0
    %v798 = vsel %vm782, 1, 0
    %v799 = vcvt.s32.f32 %v783
    %v800 = vcvt.s32.f32 %v784
    %v801 = vcvt.s32.f32 %v785
    %v802 = vcvt.s32.f32 %v786
    %v803 = vcvt.s32.f32 %v787
    %v804 = vcvt.s32.f32 %v788
    %v805 = vcvt.s32.f32 %v789
    %v806 = vcvt.s32.f32 %v790
    %v807 = vcvt.s32.f32 %v791
    %v808 = vcvt.s32.f32 %v792
    %v809 = vcvt.s32.f32 %v793
    %v810 = vcvt.s32.f32 %v794
    %v811 = vcvt.s32.f32 %v795
    %v812 = vcvt.s32.f32 %v796
    %v813 = vcvt.s32.f32 %v797
    %v814 = vcvt.s32.f32 %v798
    %v815 = vadd.f32 %v639, %v799
    %v816 = vadd.f32 %v640, %v800
    %v817 = vadd.f32 %v641, %v801
    %v818 = vadd.f32 %v642, %v802
    %v819 = vadd.f32 %v643, %v803
    %v820 = vadd.f32 %v644, %v804
    %v821 = vadd.f32 %v645, %v805
    %v822 = vadd.f32 %v646, %v806
    %v823 = vadd.f32 %v647, %v807
    %v824 = vadd.f32 %v648, %v808
    %v825 = vadd.f32 %v649, %v809
    %v826 = vadd.f32 %v650, %v810
    %v827 = vadd.f32 %v651, %v811
    %v828 = vadd.f32 %v652, %v812
    %v829 = vadd.f32 %v653, %v813
    %v830 = vadd.f32 %v654, %v814
    %v831 = vsel %vm767, 3e+38, %v655
    %v832 = vsel %vm768, 3e+38, %v656
    %v833 = vsel %vm769, 3e+38, %v657
    %v834 = vsel %vm770, 3e+38, %v658
    %v835 = vsel %vm771, 3e+38, %v659
    %v836 = vsel %vm772, 3e+38, %v660
    %v837 = vsel %vm773, 3e+38, %v661
    %v838 = vsel %vm774, 3e+38, %v662
    %v839 = vsel %vm775, 3e+38, %v663
    %v840 = vsel %vm776, 3e+38, %v664
    %v841 = vsel %vm777, 3e+38, %v665
    %v842 = vsel %vm778, 3e+38, %v666
    %v843 = vsel %vm779, 3e+38, %v667
    %v844 = vsel %vm780, 3e+38, %v668
    %v845 = vsel %vm781, 3e+38, %v669
    %v846 = vsel %vm782, 3e+38, %v670
    %847 = vmin.xlane.f32.xlu0 %v831
    %v848 = vpop.xlane.xlu0 %847
    %849 = vmin.xlane.f32.xlu0 %v832
    %v850 = vpop.xlane.xlu0 %849
    %851 = vmin.xlane.f32.xlu0 %v833
    %v852 = vpop.xlane.xlu0 %851
    %853 = vmin.xlane.f32.xlu0 %v834
    %v854 = vpop.xlane.xlu0 %853
    %855 = vmin.xlane.f32.xlu0 %v835
    %v856 = vpop.xlane.xlu0 %855
    %857 = vmin.xlane.f32.xlu0 %v836
    %v858 = vpop.xlane.xlu0 %857
    %859 = vmin.xlane.f32.xlu0 %v837
    %v860 = vpop.xlane.xlu0 %859
    %861 = vmin.xlane.f32.xlu0 %v838
    %v862 = vpop.xlane.xlu0 %861
    %863 = vmin.xlane.f32.xlu0 %v839
    %v864 = vpop.xlane.xlu0 %863
    %865 = vmin.xlane.f32.xlu0 %v840
    %v866 = vpop.xlane.xlu0 %865
    %867 = vmin.xlane.f32.xlu0 %v841
    %v868 = vpop.xlane.xlu0 %867
    %869 = vmin.xlane.f32.xlu0 %v842
    %v870 = vpop.xlane.xlu0 %869
    %871 = vmin.xlane.f32.xlu0 %v843
    %v872 = vpop.xlane.xlu0 %871
    %873 = vmin.xlane.f32.xlu0 %v844
    %v874 = vpop.xlane.xlu0 %873
    %875 = vmin.xlane.f32.xlu0 %v845
    %v876 = vpop.xlane.xlu0 %875
    %877 = vmin.xlane.f32.xlu0 %v846
    %v878 = vpop.xlane.xlu0 %877
    %vm879 = vcmp.le.f32.partialorder %v831, %v848
    %vm880 = vcmp.le.f32.partialorder %v832, %v850
    %vm881 = vcmp.le.f32.partialorder %v833, %v852
    %vm882 = vcmp.le.f32.partialorder %v834, %v854
    %vm883 = vcmp.le.f32.partialorder %v835, %v856
    %vm884 = vcmp.le.f32.partialorder %v836, %v858
    %vm885 = vcmp.le.f32.partialorder %v837, %v860
    %vm886 = vcmp.le.f32.partialorder %v838, %v862
    %vm887 = vcmp.le.f32.partialorder %v839, %v864
    %vm888 = vcmp.le.f32.partialorder %v840, %v866
    %vm889 = vcmp.le.f32.partialorder %v841, %v868
    %vm890 = vcmp.le.f32.partialorder %v842, %v870
    %vm891 = vcmp.le.f32.partialorder %v843, %v872
    %vm892 = vcmp.le.f32.partialorder %v844, %v874
    %vm893 = vcmp.le.f32.partialorder %v845, %v876
    %vm894 = vcmp.le.f32.partialorder %v846, %v878
    %v895 = vsel %vm879, %v318, 128.0
    %v896 = vsel %vm880, %v318, 128.0
    %v897 = vsel %vm881, %v318, 128.0
    %v898 = vsel %vm882, %v318, 128.0
    %v899 = vsel %vm883, %v318, 128.0
    %v900 = vsel %vm884, %v318, 128.0
    %v901 = vsel %vm885, %v318, 128.0
    %v902 = vsel %vm886, %v318, 128.0
    %v903 = vsel %vm887, %v318, 128.0
    %v904 = vsel %vm888, %v318, 128.0
    %v905 = vsel %vm889, %v318, 128.0
    %v906 = vsel %vm890, %v318, 128.0
    %v907 = vsel %vm891, %v318, 128.0
    %v908 = vsel %vm892, %v318, 128.0
    %v909 = vsel %vm893, %v318, 128.0
    %v910 = vsel %vm894, %v318, 128.0
    %911 = vmin.xlane.f32.xlu0 %v895
    %v912 = vpop.xlane.xlu0 %911
    %913 = vmin.xlane.f32.xlu0 %v896
    %v914 = vpop.xlane.xlu0 %913
    %915 = vmin.xlane.f32.xlu0 %v897
    %v916 = vpop.xlane.xlu0 %915
    %917 = vmin.xlane.f32.xlu0 %v898
    %v918 = vpop.xlane.xlu0 %917
    %919 = vmin.xlane.f32.xlu0 %v899
    %v920 = vpop.xlane.xlu0 %919
    %921 = vmin.xlane.f32.xlu0 %v900
    %v922 = vpop.xlane.xlu0 %921
    %923 = vmin.xlane.f32.xlu0 %v901
    %v924 = vpop.xlane.xlu0 %923
    %925 = vmin.xlane.f32.xlu0 %v902
    %v926 = vpop.xlane.xlu0 %925
    %927 = vmin.xlane.f32.xlu0 %v903
    %v928 = vpop.xlane.xlu0 %927
    %929 = vmin.xlane.f32.xlu0 %v904
    %v930 = vpop.xlane.xlu0 %929
    %931 = vmin.xlane.f32.xlu0 %v905
    %v932 = vpop.xlane.xlu0 %931
    %933 = vmin.xlane.f32.xlu0 %v906
    %v934 = vpop.xlane.xlu0 %933
    %935 = vmin.xlane.f32.xlu0 %v907
    %v936 = vpop.xlane.xlu0 %935
    %937 = vmin.xlane.f32.xlu0 %v908
    %v938 = vpop.xlane.xlu0 %937
    %939 = vmin.xlane.f32.xlu0 %v909
    %v940 = vpop.xlane.xlu0 %939
    %941 = vmin.xlane.f32.xlu0 %v910
    %v942 = vpop.xlane.xlu0 %941
    %vm943 = vcmp.eq.f32.partialorder %v318, %v912
    %vm944 = vcmp.eq.f32.partialorder %v318, %v914
    %vm945 = vcmp.eq.f32.partialorder %v318, %v916
    %vm946 = vcmp.eq.f32.partialorder %v318, %v918
    %vm947 = vcmp.eq.f32.partialorder %v318, %v920
    %vm948 = vcmp.eq.f32.partialorder %v318, %v922
    %vm949 = vcmp.eq.f32.partialorder %v318, %v924
    %vm950 = vcmp.eq.f32.partialorder %v318, %v926
    %vm951 = vcmp.eq.f32.partialorder %v318, %v928
    %vm952 = vcmp.eq.f32.partialorder %v318, %v930
    %vm953 = vcmp.eq.f32.partialorder %v318, %v932
    %vm954 = vcmp.eq.f32.partialorder %v318, %v934
    %vm955 = vcmp.eq.f32.partialorder %v318, %v936
    %vm956 = vcmp.eq.f32.partialorder %v318, %v938
    %vm957 = vcmp.eq.f32.partialorder %v318, %v940
    %vm958 = vcmp.eq.f32.partialorder %v318, %v942
    %v959 = vsel %vm943, 1, 0
    %v960 = vsel %vm944, 1, 0
    %v961 = vsel %vm945, 1, 0
    %v962 = vsel %vm946, 1, 0
    %v963 = vsel %vm947, 1, 0
    %v964 = vsel %vm948, 1, 0
    %v965 = vsel %vm949, 1, 0
    %v966 = vsel %vm950, 1, 0
    %v967 = vsel %vm951, 1, 0
    %v968 = vsel %vm952, 1, 0
    %v969 = vsel %vm953, 1, 0
    %v970 = vsel %vm954, 1, 0
    %v971 = vsel %vm955, 1, 0
    %v972 = vsel %vm956, 1, 0
    %v973 = vsel %vm957, 1, 0
    %v974 = vsel %vm958, 1, 0
    %v975 = vcvt.s32.f32 %v959
    %v976 = vcvt.s32.f32 %v960
    %v977 = vcvt.s32.f32 %v961
    %v978 = vcvt.s32.f32 %v962
    %v979 = vcvt.s32.f32 %v963
    %v980 = vcvt.s32.f32 %v964
    %v981 = vcvt.s32.f32 %v965
    %v982 = vcvt.s32.f32 %v966
    %v983 = vcvt.s32.f32 %v967
    %v984 = vcvt.s32.f32 %v968
    %v985 = vcvt.s32.f32 %v969
    %v986 = vcvt.s32.f32 %v970
    %v987 = vcvt.s32.f32 %v971
    %v988 = vcvt.s32.f32 %v972
    %v989 = vcvt.s32.f32 %v973
    %v990 = vcvt.s32.f32 %v974
    %v991 = vadd.f32 %v815, %v975
    %v992 = vadd.f32 %v816, %v976
    %v993 = vadd.f32 %v817, %v977
    %v994 = vadd.f32 %v818, %v978
    %v995 = vadd.f32 %v819, %v979
    %v996 = vadd.f32 %v820, %v980
    %v997 = vadd.f32 %v821, %v981
    %v998 = vadd.f32 %v822, %v982
    %v999 = vadd.f32 %v823, %v983
    %v1000 = vadd.f32 %v824, %v984
    %v1001 = vadd.f32 %v825, %v985
    %v1002 = vadd.f32 %v826, %v986
    %v1003 = vadd.f32 %v827, %v987
    %v1004 = vadd.f32 %v828, %v988
    %v1005 = vadd.f32 %v829, %v989
    %v1006 = vadd.f32 %v830, %v990
    %v1007 = vsel %vm943, 3e+38, %v831
    %v1008 = vsel %vm944, 3e+38, %v832
    %v1009 = vsel %vm945, 3e+38, %v833
    %v1010 = vsel %vm946, 3e+38, %v834
    %v1011 = vsel %vm947, 3e+38, %v835
    %v1012 = vsel %vm948, 3e+38, %v836
    %v1013 = vsel %vm949, 3e+38, %v837
    %v1014 = vsel %vm950, 3e+38, %v838
    %v1015 = vsel %vm951, 3e+38, %v839
    %v1016 = vsel %vm952, 3e+38, %v840
    %v1017 = vsel %vm953, 3e+38, %v841
    %v1018 = vsel %vm954, 3e+38, %v842
    %v1019 = vsel %vm955, 3e+38, %v843
    %v1020 = vsel %vm956, 3e+38, %v844
    %v1021 = vsel %vm957, 3e+38, %v845
    %v1022 = vsel %vm958, 3e+38, %v846
    %1023 = vmin.xlane.f32.xlu0 %v1007
    %v1024 = vpop.xlane.xlu0 %1023
    %1025 = vmin.xlane.f32.xlu0 %v1008
    %v1026 = vpop.xlane.xlu0 %1025
    %1027 = vmin.xlane.f32.xlu0 %v1009
    %v1028 = vpop.xlane.xlu0 %1027
    %1029 = vmin.xlane.f32.xlu0 %v1010
    %v1030 = vpop.xlane.xlu0 %1029
    %1031 = vmin.xlane.f32.xlu0 %v1011
    %v1032 = vpop.xlane.xlu0 %1031
    %1033 = vmin.xlane.f32.xlu0 %v1012
    %v1034 = vpop.xlane.xlu0 %1033
    %1035 = vmin.xlane.f32.xlu0 %v1013
    %v1036 = vpop.xlane.xlu0 %1035
    %1037 = vmin.xlane.f32.xlu0 %v1014
    %v1038 = vpop.xlane.xlu0 %1037
    %1039 = vmin.xlane.f32.xlu0 %v1015
    %v1040 = vpop.xlane.xlu0 %1039
    %1041 = vmin.xlane.f32.xlu0 %v1016
    %v1042 = vpop.xlane.xlu0 %1041
    %1043 = vmin.xlane.f32.xlu0 %v1017
    %v1044 = vpop.xlane.xlu0 %1043
    %1045 = vmin.xlane.f32.xlu0 %v1018
    %v1046 = vpop.xlane.xlu0 %1045
    %1047 = vmin.xlane.f32.xlu0 %v1019
    %v1048 = vpop.xlane.xlu0 %1047
    %1049 = vmin.xlane.f32.xlu0 %v1020
    %v1050 = vpop.xlane.xlu0 %1049
    %1051 = vmin.xlane.f32.xlu0 %v1021
    %v1052 = vpop.xlane.xlu0 %1051
    %1053 = vmin.xlane.f32.xlu0 %v1022
    %v1054 = vpop.xlane.xlu0 %1053
    %vm1055 = vcmp.le.f32.partialorder %v1007, %v1024
    %vm1056 = vcmp.le.f32.partialorder %v1008, %v1026
    %vm1057 = vcmp.le.f32.partialorder %v1009, %v1028
    %vm1058 = vcmp.le.f32.partialorder %v1010, %v1030
    %vm1059 = vcmp.le.f32.partialorder %v1011, %v1032
    %vm1060 = vcmp.le.f32.partialorder %v1012, %v1034
    %vm1061 = vcmp.le.f32.partialorder %v1013, %v1036
    %vm1062 = vcmp.le.f32.partialorder %v1014, %v1038
    %vm1063 = vcmp.le.f32.partialorder %v1015, %v1040
    %vm1064 = vcmp.le.f32.partialorder %v1016, %v1042
    %vm1065 = vcmp.le.f32.partialorder %v1017, %v1044
    %vm1066 = vcmp.le.f32.partialorder %v1018, %v1046
    %vm1067 = vcmp.le.f32.partialorder %v1019, %v1048
    %vm1068 = vcmp.le.f32.partialorder %v1020, %v1050
    %vm1069 = vcmp.le.f32.partialorder %v1021, %v1052
    %vm1070 = vcmp.le.f32.partialorder %v1022, %v1054
    %v1071 = vsel %vm1055, %v318, 128.0
    %v1072 = vsel %vm1056, %v318, 128.0
    %v1073 = vsel %vm1057, %v318, 128.0
    %v1074 = vsel %vm1058, %v318, 128.0
    %v1075 = vsel %vm1059, %v318, 128.0
    %v1076 = vsel %vm1060, %v318, 128.0
    %v1077 = vsel %vm1061, %v318, 128.0
    %v1078 = vsel %vm1062, %v318, 128.0
    %v1079 = vsel %vm1063, %v318, 128.0
    %v1080 = vsel %vm1064, %v318, 128.0
    %v1081 = vsel %vm1065, %v318, 128.0
    %v1082 = vsel %vm1066, %v318, 128.0
    %v1083 = vsel %vm1067, %v318, 128.0
    %v1084 = vsel %vm1068, %v318, 128.0
    %v1085 = vsel %vm1069, %v318, 128.0
    %v1086 = vsel %vm1070, %v318, 128.0
    %1087 = vmin.xlane.f32.xlu0 %v1071
    %v1088 = vpop.xlane.xlu0 %1087
    %1089 = vmin.xlane.f32.xlu0 %v1072
    %v1090 = vpop.xlane.xlu0 %1089
    %1091 = vmin.xlane.f32.xlu0 %v1073
    %v1092 = vpop.xlane.xlu0 %1091
    %1093 = vmin.xlane.f32.xlu0 %v1074
    %v1094 = vpop.xlane.xlu0 %1093
    %1095 = vmin.xlane.f32.xlu0 %v1075
    %v1096 = vpop.xlane.xlu0 %1095
    %1097 = vmin.xlane.f32.xlu0 %v1076
    %v1098 = vpop.xlane.xlu0 %1097
    %1099 = vmin.xlane.f32.xlu0 %v1077
    %v1100 = vpop.xlane.xlu0 %1099
    %1101 = vmin.xlane.f32.xlu0 %v1078
    %v1102 = vpop.xlane.xlu0 %1101
    %1103 = vmin.xlane.f32.xlu0 %v1079
    %v1104 = vpop.xlane.xlu0 %1103
    %1105 = vmin.xlane.f32.xlu0 %v1080
    %v1106 = vpop.xlane.xlu0 %1105
    %1107 = vmin.xlane.f32.xlu0 %v1081
    %v1108 = vpop.xlane.xlu0 %1107
    %1109 = vmin.xlane.f32.xlu0 %v1082
    %v1110 = vpop.xlane.xlu0 %1109
    %1111 = vmin.xlane.f32.xlu0 %v1083
    %v1112 = vpop.xlane.xlu0 %1111
    %1113 = vmin.xlane.f32.xlu0 %v1084
    %v1114 = vpop.xlane.xlu0 %1113
    %1115 = vmin.xlane.f32.xlu0 %v1085
    %v1116 = vpop.xlane.xlu0 %1115
    %1117 = vmin.xlane.f32.xlu0 %v1086
    %v1118 = vpop.xlane.xlu0 %1117
    %vm1119 = vcmp.eq.f32.partialorder %v318, %v1088
    %vm1120 = vcmp.eq.f32.partialorder %v318, %v1090
    %vm1121 = vcmp.eq.f32.partialorder %v318, %v1092
    %vm1122 = vcmp.eq.f32.partialorder %v318, %v1094
    %vm1123 = vcmp.eq.f32.partialorder %v318, %v1096
    %vm1124 = vcmp.eq.f32.partialorder %v318, %v1098
    %vm1125 = vcmp.eq.f32.partialorder %v318, %v1100
    %vm1126 = vcmp.eq.f32.partialorder %v318, %v1102
    %vm1127 = vcmp.eq.f32.partialorder %v318, %v1104
    %vm1128 = vcmp.eq.f32.partialorder %v318, %v1106
    %vm1129 = vcmp.eq.f32.partialorder %v318, %v1108
    %vm1130 = vcmp.eq.f32.partialorder %v318, %v1110
    %vm1131 = vcmp.eq.f32.partialorder %v318, %v1112
    %vm1132 = vcmp.eq.f32.partialorder %v318, %v1114
    %vm1133 = vcmp.eq.f32.partialorder %v318, %v1116
    %vm1134 = vcmp.eq.f32.partialorder %v318, %v1118
    %v1135 = vsel %vm1119, 1, 0
    %v1136 = vsel %vm1120, 1, 0
    %v1137 = vsel %vm1121, 1, 0
    %v1138 = vsel %vm1122, 1, 0
    %v1139 = vsel %vm1123, 1, 0
    %v1140 = vsel %vm1124, 1, 0
    %v1141 = vsel %vm1125, 1, 0
    %v1142 = vsel %vm1126, 1, 0
    %v1143 = vsel %vm1127, 1, 0
    %v1144 = vsel %vm1128, 1, 0
    %v1145 = vsel %vm1129, 1, 0
    %v1146 = vsel %vm1130, 1, 0
    %v1147 = vsel %vm1131, 1, 0
    %v1148 = vsel %vm1132, 1, 0
    %v1149 = vsel %vm1133, 1, 0
    %v1150 = vsel %vm1134, 1, 0
    %v1151 = vcvt.s32.f32 %v1135
    %v1152 = vcvt.s32.f32 %v1136
    %v1153 = vcvt.s32.f32 %v1137
    %v1154 = vcvt.s32.f32 %v1138
    %v1155 = vcvt.s32.f32 %v1139
    %v1156 = vcvt.s32.f32 %v1140
    %v1157 = vcvt.s32.f32 %v1141
    %v1158 = vcvt.s32.f32 %v1142
    %v1159 = vcvt.s32.f32 %v1143
    %v1160 = vcvt.s32.f32 %v1144
    %v1161 = vcvt.s32.f32 %v1145
    %v1162 = vcvt.s32.f32 %v1146
    %v1163 = vcvt.s32.f32 %v1147
    %v1164 = vcvt.s32.f32 %v1148
    %v1165 = vcvt.s32.f32 %v1149
    %v1166 = vcvt.s32.f32 %v1150
    %v1167 = vadd.f32 %v991, %v1151
    %v1168 = vadd.f32 %v992, %v1152
    %v1169 = vadd.f32 %v993, %v1153
    %v1170 = vadd.f32 %v994, %v1154
    %v1171 = vadd.f32 %v995, %v1155
    %v1172 = vadd.f32 %v996, %v1156
    %v1173 = vadd.f32 %v997, %v1157
    %v1174 = vadd.f32 %v998, %v1158
    %v1175 = vadd.f32 %v999, %v1159
    %v1176 = vadd.f32 %v1000, %v1160
    %v1177 = vadd.f32 %v1001, %v1161
    %v1178 = vadd.f32 %v1002, %v1162
    %v1179 = vadd.f32 %v1003, %v1163
    %v1180 = vadd.f32 %v1004, %v1164
    %v1181 = vadd.f32 %v1005, %v1165
    %v1182 = vadd.f32 %v1006, %v1166
    %1183 = vmatprep.subr.mxu0 0.0
    %1184 = vmatpush1.xpose.msra.mxu0 %v1182
    %1185 = vmatprep.subr.mxu0 0.0
    %1186 = vmatpush1.xpose.msra.mxu0 %v1181
    %1187 = vmatprep.subr.mxu0 0.0
    %1188 = vmatpush1.xpose.msra.mxu0 %v1180
    %1189 = vmatprep.subr.mxu0 0.0
    %1190 = vmatpush1.xpose.msra.mxu0 %v1179
    %1191 = vmatprep.subr.mxu0 0.0
    %1192 = vmatpush1.xpose.msra.mxu0 %v1178
    %1193 = vmatprep.subr.mxu0 0.0
    %1194 = vmatpush1.xpose.msra.mxu0 %v1177
    %1195 = vmatprep.subr.mxu0 0.0
    %1196 = vmatpush1.xpose.msra.mxu0 %v1176
    %1197 = vmatprep.subr.mxu0 0.0
    %1198 = vmatpush1.xpose.msra.mxu0 %v1175
    %1199 = vmatprep.subr.mxu0 0.0
    %1200 = vmatpush1.xpose.msra.mxu0 %v1174
    %1201 = vmatprep.subr.mxu0 0.0
    %1202 = vmatpush1.xpose.msra.mxu0 %v1173
    %1203 = vmatprep.subr.mxu0 0.0
    %1204 = vmatpush1.xpose.msra.mxu0 %v1172
    %1205 = vmatprep.subr.mxu0 0.0
    %1206 = vmatpush1.xpose.msra.mxu0 %v1171
    %1207 = vmatprep.subr.mxu0 0.0
    %1208 = vmatpush1.xpose.msra.mxu0 %v1170
    %1209 = vmatprep.subr.mxu0 0.0
    %1210 = vmatpush1.xpose.msra.mxu0 %v1169
    %1211 = vmatprep.subr.mxu0 0.0
    %1212 = vmatpush1.xpose.msra.mxu0 %v1168
    %1213 = vmatprep.subr.mxu0 0.0
    %1214 = vmatpush1.xpose.msra.mxu0 %v1167
    %1215 = vmatprep.subr.mxu0 0.0
    %1216 = vmatpush2.xpose.msra.mxu0 0.0
    %1217 = vmatprep.subr.mxu0 0.0
    %1218 = vmatpush2.xpose.msra.mxu0 0.0
    %1219 = vmatprep.subr.mxu0 0.0
    %1220 = vmatpush2.xpose.msra.mxu0 0.0
    %1221 = vmatprep.subr.mxu0 0.0
    %1222 = vmatpush2.xpose.msra.mxu0 0.0
    %1223 = vmatprep.subr.mxu0 0.0
    %1224 = vmatpush2.xpose.msra.mxu0 0.0
    %1225 = vmatprep.subr.mxu0 0.0
    %1226 = vmatpush2.xpose.msra.mxu0 0.0
    %1227 = vmatprep.subr.mxu0 0.0
    %1228 = vmatpush2.xpose.msra.mxu0 0.0
    %1229 = vmatprep.subr.mxu0 0.0
    %1230 = vmatpush2.xpose.msra.mxu0 0.0
    %1231 = vmatprep.subr.mxu0 0.0
    %1232 = vmatpush2.xpose.msra.mxu0 0.0
    %1233 = vmatprep.subr.mxu0 0.0
    %1234 = vmatpush2.xpose.msra.mxu0 0.0
    %1235 = vmatprep.subr.mxu0 0.0
    %1236 = vmatpush2.xpose.msra.mxu0 0.0
    %1237 = vmatprep.subr.mxu0 0.0
    %1238 = vmatpush2.xpose.msra.mxu0 0.0
    %1239 = vmatprep.subr.mxu0 0.0
    %1240 = vmatpush2.xpose.msra.mxu0 0.0
    %1241 = vmatprep.subr.mxu0 0.0
    %1242 = vmatpush2.xpose.msra.mxu0 0.0
    %1243 = vmatprep.subr.mxu0 0.0
    %1244 = vmatpush2.xpose.msra.mxu0 0.0
    %1245 = vmatprep.subr.mxu0 0.0
    %1246 = vmatpush2.xpose.msra.mxu0 0.0
    %1247 = vmatprep.mubr.f32.mxu0 0.0
    %1248 = vmatmul.mubr.f32.gmra.mxu0 %v51
    %v1249 = vpop.f32.mrf.mxu0
    %v1250 = vadd.f32 0.0, %v1249
    %v1251 = vpop.f32.mrf.mxu0
    %1252 = vdwg.mxu0
    %1253 = vst [vmem:[#allocation2] sm:$0x1] %v1250
    // Predicated region
    $region18: #{tpu_custom_call.1} parent=1 // pred_check
      _
    $region19: #{tpu_custom_call.1} parent=1 // pred_check_branch
      %1255 = sbr.rel (0) target = $region21
    $region20: #{tpu_custom_call.1} parent=1 // pred_region
      %s1257 = ssub.s32 16, 16
      %1258 = vsyncadd [#allocation3], %s1257
      %s1260 = sshll.u32 [#allocation2], 4
      %s1261 = int_to_ptr.vmem [resolvable:$true] %s1260
      %1263 = dma.vmem_to_hbm [thread:$0]  %s1261, 16, %s4, [#allocation3]
    $region21: #{tpu_custom_call.1} parent=1 // pred_fallthru
      _
    // Predicated region
    $region22: #{tpu_custom_call.1} parent=1 // pred_check
      _
    $region23: #{tpu_custom_call.1} parent=1 // pred_check_branch
      %1265 = sbr.rel (0) target = $region25
    $region24: #{tpu_custom_call.1} parent=1 // pred_region
      %1266 = dma.done [#allocation3], 16
    $region25: #{tpu_custom_call.1} parent=1 // pred_fallthru
      _
    %1267 = vsyncpa [#allocation3], 1

// kernel: tpu_custom_call.1
$region0: #{tpu_custom_call.1}
  #allocation0 [shape = 'u32[]', space=smem, size = 0x4, offset = 0x4, fixed_abs, tag = 'smem constant byte address 0x4 - core index']
  #allocation1 [shape = 'u32[144,128]{1,0:T(1,128)}', space=vmem, size = 0x12000, scoped, tag = 'internal scratch']
  %s0 = inlined_call_operand.vmem [shape: f32[128,16], index: 0, kind: input, shape index: {}]
  %s1 = inlined_call_operand.vmem [shape: f32[128,16], index: 1, kind: input, shape index: {}]
  %s2 = inlined_call_operand.vmem [shape: f32[1,128], index: 2, kind: input, shape index: {}]
  %s3 = inlined_call_operand.vmem [shape: f32[1,128], index: 3, kind: input, shape index: {}]
  %s4 = inlined_call_operand.hbm [shape: f32[1,128], index: 4, kind: output, shape index: {}]
  %s5 = sld [smem:[#allocation0]]
  $region26: #{tpu_custom_call.1} parent=0
    _
  %s7 = ssub.s32 1, %s5
  %s8 = scalar_select 0, %s7, %s5
  $region1: #{tpu_custom_call.1} parent=0
    #allocation2 [shape = 'u8[512]{0}', space=vmem, size = 0x400, scoped, tag = 'output window, operand 0, single buffered']
    #allocation3 [shape = 's32[1]{0}', space=sflag, size = 0x4, scoped, tag = 'scoped memory for tpu_custom_call.1']
    %9 = vsyncpa [#allocation3], 0
    // Predicated region
    $region2: #{tpu_custom_call.1} parent=1 // pred_check
      _
    $region3: #{tpu_custom_call.1} parent=1 // pred_check_branch
      %11 = sbr.rel (0) target = $region5
    $region4: #{tpu_custom_call.1} parent=1 // pred_region
      _
    $region5: #{tpu_custom_call.1} parent=1 // pred_fallthru
      _
    // Predicated region
    $region6: #{tpu_custom_call.1} parent=1 // pred_check
      _
    $region7: #{tpu_custom_call.1} parent=1 // pred_check_branch
      %13 = sbr.rel (0) target = $region9
    $region8: #{tpu_custom_call.1} parent=1 // pred_region
      _
    $region9: #{tpu_custom_call.1} parent=1 // pred_fallthru
      _
    // Predicated region
    $region10: #{tpu_custom_call.1} parent=1 // pred_check
      _
    $region11: #{tpu_custom_call.1} parent=1 // pred_check_branch
      %15 = sbr.rel (0) target = $region13
    $region12: #{tpu_custom_call.1} parent=1 // pred_region
      _
    $region13: #{tpu_custom_call.1} parent=1 // pred_fallthru
      _
    // Predicated region
    $region14: #{tpu_custom_call.1} parent=1 // pred_check
      _
    $region15: #{tpu_custom_call.1} parent=1 // pred_check_branch
      %17 = sbr.rel (0) target = $region17
    $region16: #{tpu_custom_call.1} parent=1 // pred_region
      _
    $region17: #{tpu_custom_call.1} parent=1 // pred_fallthru
      _
    %v18 = vld [vmem:[%s0] sm:$0xff]
    %v19 = vld [vmem:[%s0 + $0x8] sm:$0xff]
    %v20 = vld [vmem:[%s0 + $0x10] sm:$0xff]
    %v21 = vld [vmem:[%s0 + $0x18] sm:$0xff]
    %v22 = vld [vmem:[%s0 + $0x20] sm:$0xff]
    %v23 = vld [vmem:[%s0 + $0x28] sm:$0xff]
    %v24 = vld [vmem:[%s0 + $0x30] sm:$0xff]
    %v25 = vld [vmem:[%s0 + $0x38] sm:$0xff]
    %v26 = vld [vmem:[%s0 + $0x40] sm:$0xff]
    %v27 = vld [vmem:[%s0 + $0x48] sm:$0xff]
    %v28 = vld [vmem:[%s0 + $0x50] sm:$0xff]
    %v29 = vld [vmem:[%s0 + $0x58] sm:$0xff]
    %v30 = vld [vmem:[%s0 + $0x60] sm:$0xff]
    %v31 = vld [vmem:[%s0 + $0x68] sm:$0xff]
    %v32 = vld [vmem:[%s0 + $0x70] sm:$0xff]
    %v33 = vld [vmem:[%s0 + $0x78] sm:$0xff]
    %v34 = vld [vmem:[%s1] sm:$0xff]
    %v35 = vld [vmem:[%s1 + $0x8] sm:$0xff]
    %v36 = vld [vmem:[%s1 + $0x10] sm:$0xff]
    %v37 = vld [vmem:[%s1 + $0x18] sm:$0xff]
    %v38 = vld [vmem:[%s1 + $0x20] sm:$0xff]
    %v39 = vld [vmem:[%s1 + $0x28] sm:$0xff]
    %v40 = vld [vmem:[%s1 + $0x30] sm:$0xff]
    %v41 = vld [vmem:[%s1 + $0x38] sm:$0xff]
    %v42 = vld [vmem:[%s1 + $0x40] sm:$0xff]
    %v43 = vld [vmem:[%s1 + $0x48] sm:$0xff]
    %v44 = vld [vmem:[%s1 + $0x50] sm:$0xff]
    %v45 = vld [vmem:[%s1 + $0x58] sm:$0xff]
    %v46 = vld [vmem:[%s1 + $0x60] sm:$0xff]
    %v47 = vld [vmem:[%s1 + $0x68] sm:$0xff]
    %v48 = vld [vmem:[%s1 + $0x70] sm:$0xff]
    %v49 = vld [vmem:[%s1 + $0x78] sm:$0xff]
    %v50 = vld [vmem:[%s2] sm:$0x1]
    %v51 = vld [vmem:[%s3] sm:$0x1]
    %vm52 = vcmask 130048
    %v54 = vsel %vm52, %v18, 0
    %v57 = vsel %vm52, %v19, 0
    %v60 = vsel %vm52, %v20, 0
    %v63 = vsel %vm52, %v21, 0
    %v66 = vsel %vm52, %v22, 0
    %v69 = vsel %vm52, %v23, 0
    %v72 = vsel %vm52, %v24, 0
    %v75 = vsel %vm52, %v25, 0
    %v78 = vsel %vm52, %v26, 0
    %v81 = vsel %vm52, %v27, 0
    %v84 = vsel %vm52, %v28, 0
    %v87 = vsel %vm52, %v29, 0
    %v90 = vsel %vm52, %v30, 0
    %v93 = vsel %vm52, %v31, 0
    %v96 = vsel %vm52, %v32, 0
    %v99 = vsel %vm52, %v33, 0
    %v102 = vsel %vm52, %v34, 0
    %v105 = vsel %vm52, %v35, 0
    %v108 = vsel %vm52, %v36, 0
    %v111 = vsel %vm52, %v37, 0
    %v114 = vsel %vm52, %v38, 0
    %v117 = vsel %vm52, %v39, 0
    %v120 = vsel %vm52, %v40, 0
    %v123 = vsel %vm52, %v41, 0
    %v126 = vsel %vm52, %v42, 0
    %v129 = vsel %vm52, %v43, 0
    %v132 = vsel %vm52, %v44, 0
    %v135 = vsel %vm52, %v45, 0
    %v138 = vsel %vm52, %v46, 0
    %v141 = vsel %vm52, %v47, 0
    %v144 = vsel %vm52, %v48, 0
    %v147 = vsel %vm52, %v49, 0
    %149 = vmatprep.subr.mxu0 0.0
    %150 = vmatpush1.xpose.msra.mxu0 %v147
    %151 = vmatprep.subr.mxu0 0.0
    %152 = vmatpush1.xpose.msra.mxu0 %v144
    %153 = vmatprep.subr.mxu0 0.0
    %154 = vmatpush1.xpose.msra.mxu0 %v141
    %155 = vmatprep.subr.mxu0 0.0
    %156 = vmatpush1.xpose.msra.mxu0 %v138
    %157 = vmatprep.subr.mxu0 0.0
    %158 = vmatpush1.xpose.msra.mxu0 %v135
    %159 = vmatprep.subr.mxu0 0.0
    %160 = vmatpush1.xpose.msra.mxu0 %v132
    %161 = vmatprep.subr.mxu0 0.0
    %162 = vmatpush1.xpose.msra.mxu0 %v129
    %163 = vmatprep.subr.mxu0 0.0
    %164 = vmatpush1.xpose.msra.mxu0 %v126
    %165 = vmatprep.subr.mxu0 0.0
    %166 = vmatpush1.xpose.msra.mxu0 %v123
    %167 = vmatprep.subr.mxu0 0.0
    %168 = vmatpush1.xpose.msra.mxu0 %v120
    %169 = vmatprep.subr.mxu0 0.0
    %170 = vmatpush1.xpose.msra.mxu0 %v117
    %171 = vmatprep.subr.mxu0 0.0
    %172 = vmatpush1.xpose.msra.mxu0 %v114
    %173 = vmatprep.subr.mxu0 0.0
    %174 = vmatpush1.xpose.msra.mxu0 %v111
    %175 = vmatprep.subr.mxu0 0.0
    %176 = vmatpush1.xpose.msra.mxu0 %v108
    %177 = vmatprep.subr.mxu0 0.0
    %178 = vmatpush1.xpose.msra.mxu0 %v105
    %179 = vmatprep.subr.mxu0 0.0
    %180 = vmatpush1.xpose.msra.mxu0 %v102
    %181 = vmatprep.subr.mxu0 0.0
    %182 = vmatpush2.xpose.msra.mxu0 0.0
    %183 = vmatprep.subr.mxu0 0.0
    %184 = vmatpush2.xpose.msra.mxu0 0.0
    %185 = vmatprep.subr.mxu0 0.0
    %186 = vmatpush2.xpose.msra.mxu0 0.0
    %187 = vmatprep.subr.mxu0 0.0
    %188 = vmatpush2.xpose.msra.mxu0 0.0
    %189 = vmatprep.subr.mxu0 0.0
    %190 = vmatpush2.xpose.msra.mxu0 0.0
    %191 = vmatprep.subr.mxu0 0.0
    %192 = vmatpush2.xpose.msra.mxu0 0.0
    %193 = vmatprep.subr.mxu0 0.0
    %194 = vmatpush2.xpose.msra.mxu0 0.0
    %195 = vmatprep.subr.mxu0 0.0
    %196 = vmatpush2.xpose.msra.mxu0 0.0
    %197 = vmatprep.subr.mxu0 0.0
    %198 = vmatpush2.xpose.msra.mxu0 0.0
    %199 = vmatprep.subr.mxu0 0.0
    %200 = vmatpush2.xpose.msra.mxu0 0.0
    %201 = vmatprep.subr.mxu0 0.0
    %202 = vmatpush2.xpose.msra.mxu0 0.0
    %203 = vmatprep.subr.mxu0 0.0
    %204 = vmatpush2.xpose.msra.mxu0 0.0
    %205 = vmatprep.subr.mxu0 0.0
    %206 = vmatpush2.xpose.msra.mxu0 0.0
    %207 = vmatprep.subr.mxu0 0.0
    %208 = vmatpush2.xpose.msra.mxu0 0.0
    %209 = vmatprep.subr.mxu0 0.0
    %210 = vmatpush2.xpose.msra.mxu0 0.0
    %211 = vmatprep.subr.mxu0 0.0
    %212 = vmatpush2.xpose.msra.mxu0 0.0
    %213 = vmatprep.mubr.f32.mxu0 0.0
    %214 = vmatmul.mubr.f32.gmra.mxu0 %v54
    %v215 = vpop.f32.mrf.mxu0
    %v216 = vadd.f32 0.0, %v215
    %v217 = vpop.f32.mrf.mxu0
    %218 = vmatprep.mubr.f32.mxu0 0.0
    %219 = vmatmul.mubr.f32.gmra.mxu0 %v57
    %v220 = vpop.f32.mrf.mxu0
    %v221 = vadd.f32 0.0, %v220
    %v222 = vpop.f32.mrf.mxu0
    %223 = vmatprep.mubr.f32.mxu0 0.0
    %224 = vmatmul.mubr.f32.gmra.mxu0 %v60
    %v225 = vpop.f32.mrf.mxu0
    %v226 = vadd.f32 0.0, %v225
    %v227 = vpop.f32.mrf.mxu0
    %228 = vmatprep.mubr.f32.mxu0 0.0
    %229 = vmatmul.mubr.f32.gmra.mxu0 %v63
    %v230 = vpop.f32.mrf.mxu0
    %v231 = vadd.f32 0.0, %v230
    %v232 = vpop.f32.mrf.mxu0
    %233 = vmatprep.mubr.f32.mxu0 0.0
    %234 = vmatmul.mubr.f32.gmra.mxu0 %v66
    %v235 = vpop.f32.mrf.mxu0
    %v236 = vadd.f32 0.0, %v235
    %v237 = vpop.f32.mrf.mxu0
    %238 = vmatprep.mubr.f32.mxu0 0.0
    %239 = vmatmul.mubr.f32.gmra.mxu0 %v69
    %v240 = vpop.f32.mrf.mxu0
    %v241 = vadd.f32 0.0, %v240
    %v242 = vpop.f32.mrf.mxu0
    %243 = vmatprep.mubr.f32.mxu0 0.0
    %244 = vmatmul.mubr.f32.gmra.mxu0 %v72
    %v245 = vpop.f32.mrf.mxu0
    %v246 = vadd.f32 0.0, %v245
    %v247 = vpop.f32.mrf.mxu0
    %248 = vmatprep.mubr.f32.mxu0 0.0
    %249 = vmatmul.mubr.f32.gmra.mxu0 %v75
    %v250 = vpop.f32.mrf.mxu0
    %v251 = vadd.f32 0.0, %v250
    %v252 = vpop.f32.mrf.mxu0
    %253 = vmatprep.mubr.f32.mxu0 0.0
    %254 = vmatmul.mubr.f32.gmra.mxu0 %v78
    %v255 = vpop.f32.mrf.mxu0
    %v256 = vadd.f32 0.0, %v255
    %v257 = vpop.f32.mrf.mxu0
    %258 = vmatprep.mubr.f32.mxu0 0.0
    %259 = vmatmul.mubr.f32.gmra.mxu0 %v81
    %v260 = vpop.f32.mrf.mxu0
    %v261 = vadd.f32 0.0, %v260
    %v262 = vpop.f32.mrf.mxu0
    %263 = vmatprep.mubr.f32.mxu0 0.0
    %264 = vmatmul.mubr.f32.gmra.mxu0 %v84
    %v265 = vpop.f32.mrf.mxu0
    %v266 = vadd.f32 0.0, %v265
    %v267 = vpop.f32.mrf.mxu0
    %268 = vmatprep.mubr.f32.mxu0 0.0
    %269 = vmatmul.mubr.f32.gmra.mxu0 %v87
    %v270 = vpop.f32.mrf.mxu0
    %v271 = vadd.f32 0.0, %v270
    %v272 = vpop.f32.mrf.mxu0
    %273 = vmatprep.mubr.f32.mxu0 0.0
    %274 = vmatmul.mubr.f32.gmra.mxu0 %v90
    %v275 = vpop.f32.mrf.mxu0
    %v276 = vadd.f32 0.0, %v275
    %v277 = vpop.f32.mrf.mxu0
    %278 = vmatprep.mubr.f32.mxu0 0.0
    %279 = vmatmul.mubr.f32.gmra.mxu0 %v93
    %v280 = vpop.f32.mrf.mxu0
    %v281 = vadd.f32 0.0, %v280
    %v282 = vpop.f32.mrf.mxu0
    %283 = vmatprep.mubr.f32.mxu0 0.0
    %284 = vmatmul.mubr.f32.gmra.mxu0 %v96
    %v285 = vpop.f32.mrf.mxu0
    %v286 = vadd.f32 0.0, %v285
    %v287 = vpop.f32.mrf.mxu0
    %288 = vmatprep.mubr.f32.mxu0 0.0
    %289 = vmatmul.mubr.f32.gmra.mxu0 %v99
    %v290 = vpop.f32.mrf.mxu0
    %v291 = vadd.f32 0.0, %v290
    %v292 = vpop.f32.mrf.mxu0
    %293 = vdwg.mxu0
    %v295 = vlaneseq
    %v296 = vshrl.u32 %v295, 7
    %v297 = vsub.s32 0, %v296
    %v298 = vrot.slane %v50, %v297
    %v300 = vsub.f32 %v298, %v216
    %v301 = vsub.f32 %v298, %v221
    %v302 = vsub.f32 %v298, %v226
    %v303 = vsub.f32 %v298, %v231
    %v304 = vsub.f32 %v298, %v236
    %v305 = vsub.f32 %v298, %v241
    %v306 = vsub.f32 %v298, %v246
    %v307 = vsub.f32 %v298, %v251
    %v308 = vsub.f32 %v298, %v256
    %v309 = vsub.f32 %v298, %v261
    %v310 = vsub.f32 %v298, %v266
    %v311 = vsub.f32 %v298, %v271
    %v312 = vsub.f32 %v298, %v276
    %v313 = vsub.f32 %v298, %v281
    %v314 = vsub.f32 %v298, %v286
    %v315 = vsub.f32 %v298, %v291
    %v316 = vlaneseq
    %v317 = vand.u32 %v316, 127
    %v318 = vcvt.s32.f32 %v317
    %319 = vmin.xlane.f32.xlu0 %v300
    %v320 = vpop.xlane.xlu0 %319
    %321 = vmin.xlane.f32.xlu0 %v301
    %v322 = vpop.xlane.xlu0 %321
    %323 = vmin.xlane.f32.xlu0 %v302
    %v324 = vpop.xlane.xlu0 %323
    %325 = vmin.xlane.f32.xlu0 %v303
    %v326 = vpop.xlane.xlu0 %325
    %327 = vmin.xlane.f32.xlu0 %v304
    %v328 = vpop.xlane.xlu0 %327
    %329 = vmin.xlane.f32.xlu0 %v305
    %v330 = vpop.xlane.xlu0 %329
    %331 = vmin.xlane.f32.xlu0 %v306
    %v332 = vpop.xlane.xlu0 %331
    %333 = vmin.xlane.f32.xlu0 %v307
    %v334 = vpop.xlane.xlu0 %333
    %335 = vmin.xlane.f32.xlu0 %v308
    %v336 = vpop.xlane.xlu0 %335
    %337 = vmin.xlane.f32.xlu0 %v309
    %v338 = vpop.xlane.xlu0 %337
    %339 = vmin.xlane.f32.xlu0 %v310
    %v340 = vpop.xlane.xlu0 %339
    %341 = vmin.xlane.f32.xlu0 %v311
    %v342 = vpop.xlane.xlu0 %341
    %343 = vmin.xlane.f32.xlu0 %v312
    %v344 = vpop.xlane.xlu0 %343
    %345 = vmin.xlane.f32.xlu0 %v313
    %v346 = vpop.xlane.xlu0 %345
    %347 = vmin.xlane.f32.xlu0 %v314
    %v348 = vpop.xlane.xlu0 %347
    %349 = vmin.xlane.f32.xlu0 %v315
    %v350 = vpop.xlane.xlu0 %349
    %vm351 = vcmp.le.f32.partialorder %v300, %v320
    %vm352 = vcmp.le.f32.partialorder %v301, %v322
    %vm353 = vcmp.le.f32.partialorder %v302, %v324
    %vm354 = vcmp.le.f32.partialorder %v303, %v326
    %vm355 = vcmp.le.f32.partialorder %v304, %v328
    %vm356 = vcmp.le.f32.partialorder %v305, %v330
    %vm357 = vcmp.le.f32.partialorder %v306, %v332
    %vm358 = vcmp.le.f32.partialorder %v307, %v334
    %vm359 = vcmp.le.f32.partialorder %v308, %v336
    %vm360 = vcmp.le.f32.partialorder %v309, %v338
    %vm361 = vcmp.le.f32.partialorder %v310, %v340
    %vm362 = vcmp.le.f32.partialorder %v311, %v342
    %vm363 = vcmp.le.f32.partialorder %v312, %v344
    %vm364 = vcmp.le.f32.partialorder %v313, %v346
    %vm365 = vcmp.le.f32.partialorder %v314, %v348
    %vm366 = vcmp.le.f32.partialorder %v315, %v350
    %v367 = vsel %vm351, %v318, 128.0
    %v368 = vsel %vm352, %v318, 128.0
    %v369 = vsel %vm353, %v318, 128.0
    %v370 = vsel %vm354, %v318, 128.0
    %v371 = vsel %vm355, %v318, 128.0
    %v372 = vsel %vm356, %v318, 128.0
    %v373 = vsel %vm357, %v318, 128.0
    %v374 = vsel %vm358, %v318, 128.0
    %v375 = vsel %vm359, %v318, 128.0
    %v376 = vsel %vm360, %v318, 128.0
    %v377 = vsel %vm361, %v318, 128.0
    %v378 = vsel %vm362, %v318, 128.0
    %v379 = vsel %vm363, %v318, 128.0
    %v380 = vsel %vm364, %v318, 128.0
    %v381 = vsel %vm365, %v318, 128.0
    %v382 = vsel %vm366, %v318, 128.0
    %383 = vmin.xlane.f32.xlu0 %v367
    %v384 = vpop.xlane.xlu0 %383
    %385 = vmin.xlane.f32.xlu0 %v368
    %v386 = vpop.xlane.xlu0 %385
    %387 = vmin.xlane.f32.xlu0 %v369
    %v388 = vpop.xlane.xlu0 %387
    %389 = vmin.xlane.f32.xlu0 %v370
    %v390 = vpop.xlane.xlu0 %389
    %391 = vmin.xlane.f32.xlu0 %v371
    %v392 = vpop.xlane.xlu0 %391
    %393 = vmin.xlane.f32.xlu0 %v372
    %v394 = vpop.xlane.xlu0 %393
    %395 = vmin.xlane.f32.xlu0 %v373
    %v396 = vpop.xlane.xlu0 %395
    %397 = vmin.xlane.f32.xlu0 %v374
    %v398 = vpop.xlane.xlu0 %397
    %399 = vmin.xlane.f32.xlu0 %v375
    %v400 = vpop.xlane.xlu0 %399
    %401 = vmin.xlane.f32.xlu0 %v376
    %v402 = vpop.xlane.xlu0 %401
    %403 = vmin.xlane.f32.xlu0 %v377
    %v404 = vpop.xlane.xlu0 %403
    %405 = vmin.xlane.f32.xlu0 %v378
    %v406 = vpop.xlane.xlu0 %405
    %407 = vmin.xlane.f32.xlu0 %v379
    %v408 = vpop.xlane.xlu0 %407
    %409 = vmin.xlane.f32.xlu0 %v380
    %v410 = vpop.xlane.xlu0 %409
    %411 = vmin.xlane.f32.xlu0 %v381
    %v412 = vpop.xlane.xlu0 %411
    %413 = vmin.xlane.f32.xlu0 %v382
    %v414 = vpop.xlane.xlu0 %413
    %vm415 = vcmp.eq.f32.partialorder %v318, %v384
    %vm416 = vcmp.eq.f32.partialorder %v318, %v386
    %vm417 = vcmp.eq.f32.partialorder %v318, %v388
    %vm418 = vcmp.eq.f32.partialorder %v318, %v390
    %vm419 = vcmp.eq.f32.partialorder %v318, %v392
    %vm420 = vcmp.eq.f32.partialorder %v318, %v394
    %vm421 = vcmp.eq.f32.partialorder %v318, %v396
    %vm422 = vcmp.eq.f32.partialorder %v318, %v398
    %vm423 = vcmp.eq.f32.partialorder %v318, %v400
    %vm424 = vcmp.eq.f32.partialorder %v318, %v402
    %vm425 = vcmp.eq.f32.partialorder %v318, %v404
    %vm426 = vcmp.eq.f32.partialorder %v318, %v406
    %vm427 = vcmp.eq.f32.partialorder %v318, %v408
    %vm428 = vcmp.eq.f32.partialorder %v318, %v410
    %vm429 = vcmp.eq.f32.partialorder %v318, %v412
    %vm430 = vcmp.eq.f32.partialorder %v318, %v414
    %v431 = vsel %vm415, 1, 0
    %v432 = vsel %vm416, 1, 0
    %v433 = vsel %vm417, 1, 0
    %v434 = vsel %vm418, 1, 0
    %v435 = vsel %vm419, 1, 0
    %v436 = vsel %vm420, 1, 0
    %v437 = vsel %vm421, 1, 0
    %v438 = vsel %vm422, 1, 0
    %v439 = vsel %vm423, 1, 0
    %v440 = vsel %vm424, 1, 0
    %v441 = vsel %vm425, 1, 0
    %v442 = vsel %vm426, 1, 0
    %v443 = vsel %vm427, 1, 0
    %v444 = vsel %vm428, 1, 0
    %v445 = vsel %vm429, 1, 0
    %v446 = vsel %vm430, 1, 0
    %v447 = vcvt.s32.f32 %v431
    %v448 = vcvt.s32.f32 %v432
    %v449 = vcvt.s32.f32 %v433
    %v450 = vcvt.s32.f32 %v434
    %v451 = vcvt.s32.f32 %v435
    %v452 = vcvt.s32.f32 %v436
    %v453 = vcvt.s32.f32 %v437
    %v454 = vcvt.s32.f32 %v438
    %v455 = vcvt.s32.f32 %v439
    %v456 = vcvt.s32.f32 %v440
    %v457 = vcvt.s32.f32 %v441
    %v458 = vcvt.s32.f32 %v442
    %v459 = vcvt.s32.f32 %v443
    %v460 = vcvt.s32.f32 %v444
    %v461 = vcvt.s32.f32 %v445
    %v462 = vcvt.s32.f32 %v446
    %v463 = vadd.f32 %v447, 0.0
    %v464 = vadd.f32 %v448, 0.0
    %v465 = vadd.f32 %v449, 0.0
    %v466 = vadd.f32 %v450, 0.0
    %v467 = vadd.f32 %v451, 0.0
    %v468 = vadd.f32 %v452, 0.0
    %v469 = vadd.f32 %v453, 0.0
    %v470 = vadd.f32 %v454, 0.0
    %v471 = vadd.f32 %v455, 0.0
    %v472 = vadd.f32 %v456, 0.0
    %v473 = vadd.f32 %v457, 0.0
    %v474 = vadd.f32 %v458, 0.0
    %v475 = vadd.f32 %v459, 0.0
    %v476 = vadd.f32 %v460, 0.0
    %v477 = vadd.f32 %v461, 0.0
    %v478 = vadd.f32 %v462, 0.0
    %v479 = vsel %vm415, 3e+38, %v300
    %v480 = vsel %vm416, 3e+38, %v301
    %v481 = vsel %vm417, 3e+38, %v302
    %v482 = vsel %vm418, 3e+38, %v303
    %v483 = vsel %vm419, 3e+38, %v304
    %v484 = vsel %vm420, 3e+38, %v305
    %v485 = vsel %vm421, 3e+38, %v306
    %v486 = vsel %vm422, 3e+38, %v307
    %v487 = vsel %vm423, 3e+38, %v308
    %v488 = vsel %vm424, 3e+38, %v309
    %v489 = vsel %vm425, 3e+38, %v310
    %v490 = vsel %vm426, 3e+38, %v311
    %v491 = vsel %vm427, 3e+38, %v312
    %v492 = vsel %vm428, 3e+38, %v313
    %v493 = vsel %vm429, 3e+38, %v314
    %v494 = vsel %vm430, 3e+38, %v315
    %495 = vmin.xlane.f32.xlu0 %v479
    %v496 = vpop.xlane.xlu0 %495
    %497 = vmin.xlane.f32.xlu0 %v480
    %v498 = vpop.xlane.xlu0 %497
    %499 = vmin.xlane.f32.xlu0 %v481
    %v500 = vpop.xlane.xlu0 %499
    %501 = vmin.xlane.f32.xlu0 %v482
    %v502 = vpop.xlane.xlu0 %501
    %503 = vmin.xlane.f32.xlu0 %v483
    %v504 = vpop.xlane.xlu0 %503
    %505 = vmin.xlane.f32.xlu0 %v484
    %v506 = vpop.xlane.xlu0 %505
    %507 = vmin.xlane.f32.xlu0 %v485
    %v508 = vpop.xlane.xlu0 %507
    %509 = vmin.xlane.f32.xlu0 %v486
    %v510 = vpop.xlane.xlu0 %509
    %511 = vmin.xlane.f32.xlu0 %v487
    %v512 = vpop.xlane.xlu0 %511
    %513 = vmin.xlane.f32.xlu0 %v488
    %v514 = vpop.xlane.xlu0 %513
    %515 = vmin.xlane.f32.xlu0 %v489
    %v516 = vpop.xlane.xlu0 %515
    %517 = vmin.xlane.f32.xlu0 %v490
    %v518 = vpop.xlane.xlu0 %517
    %519 = vmin.xlane.f32.xlu0 %v491
    %v520 = vpop.xlane.xlu0 %519
    %521 = vmin.xlane.f32.xlu0 %v492
    %v522 = vpop.xlane.xlu0 %521
    %523 = vmin.xlane.f32.xlu0 %v493
    %v524 = vpop.xlane.xlu0 %523
    %525 = vmin.xlane.f32.xlu0 %v494
    %v526 = vpop.xlane.xlu0 %525
    %vm527 = vcmp.le.f32.partialorder %v479, %v496
    %vm528 = vcmp.le.f32.partialorder %v480, %v498
    %vm529 = vcmp.le.f32.partialorder %v481, %v500
    %vm530 = vcmp.le.f32.partialorder %v482, %v502
    %vm531 = vcmp.le.f32.partialorder %v483, %v504
    %vm532 = vcmp.le.f32.partialorder %v484, %v506
    %vm533 = vcmp.le.f32.partialorder %v485, %v508
    %vm534 = vcmp.le.f32.partialorder %v486, %v510
    %vm535 = vcmp.le.f32.partialorder %v487, %v512
    %vm536 = vcmp.le.f32.partialorder %v488, %v514
    %vm537 = vcmp.le.f32.partialorder %v489, %v516
    %vm538 = vcmp.le.f32.partialorder %v490, %v518
    %vm539 = vcmp.le.f32.partialorder %v491, %v520
    %vm540 = vcmp.le.f32.partialorder %v492, %v522
    %vm541 = vcmp.le.f32.partialorder %v493, %v524
    %vm542 = vcmp.le.f32.partialorder %v494, %v526
    %v543 = vsel %vm527, %v318, 128.0
    %v544 = vsel %vm528, %v318, 128.0
    %v545 = vsel %vm529, %v318, 128.0
    %v546 = vsel %vm530, %v318, 128.0
    %v547 = vsel %vm531, %v318, 128.0
    %v548 = vsel %vm532, %v318, 128.0
    %v549 = vsel %vm533, %v318, 128.0
    %v550 = vsel %vm534, %v318, 128.0
    %v551 = vsel %vm535, %v318, 128.0
    %v552 = vsel %vm536, %v318, 128.0
    %v553 = vsel %vm537, %v318, 128.0
    %v554 = vsel %vm538, %v318, 128.0
    %v555 = vsel %vm539, %v318, 128.0
    %v556 = vsel %vm540, %v318, 128.0
    %v557 = vsel %vm541, %v318, 128.0
    %v558 = vsel %vm542, %v318, 128.0
    %559 = vmin.xlane.f32.xlu0 %v543
    %v560 = vpop.xlane.xlu0 %559
    %561 = vmin.xlane.f32.xlu0 %v544
    %v562 = vpop.xlane.xlu0 %561
    %563 = vmin.xlane.f32.xlu0 %v545
    %v564 = vpop.xlane.xlu0 %563
    %565 = vmin.xlane.f32.xlu0 %v546
    %v566 = vpop.xlane.xlu0 %565
    %567 = vmin.xlane.f32.xlu0 %v547
    %v568 = vpop.xlane.xlu0 %567
    %569 = vmin.xlane.f32.xlu0 %v548
    %v570 = vpop.xlane.xlu0 %569
    %571 = vmin.xlane.f32.xlu0 %v549
    %v572 = vpop.xlane.xlu0 %571
    %573 = vmin.xlane.f32.xlu0 %v550
    %v574 = vpop.xlane.xlu0 %573
    %575 = vmin.xlane.f32.xlu0 %v551
    %v576 = vpop.xlane.xlu0 %575
    %577 = vmin.xlane.f32.xlu0 %v552
    %v578 = vpop.xlane.xlu0 %577
    %579 = vmin.xlane.f32.xlu0 %v553
    %v580 = vpop.xlane.xlu0 %579
    %581 = vmin.xlane.f32.xlu0 %v554
    %v582 = vpop.xlane.xlu0 %581
    %583 = vmin.xlane.f32.xlu0 %v555
    %v584 = vpop.xlane.xlu0 %583
    %585 = vmin.xlane.f32.xlu0 %v556
    %v586 = vpop.xlane.xlu0 %585
    %587 = vmin.xlane.f32.xlu0 %v557
    %v588 = vpop.xlane.xlu0 %587
    %589 = vmin.xlane.f32.xlu0 %v558
    %v590 = vpop.xlane.xlu0 %589
    %vm591 = vcmp.eq.f32.partialorder %v318, %v560
    %vm592 = vcmp.eq.f32.partialorder %v318, %v562
    %vm593 = vcmp.eq.f32.partialorder %v318, %v564
    %vm594 = vcmp.eq.f32.partialorder %v318, %v566
    %vm595 = vcmp.eq.f32.partialorder %v318, %v568
    %vm596 = vcmp.eq.f32.partialorder %v318, %v570
    %vm597 = vcmp.eq.f32.partialorder %v318, %v572
    %vm598 = vcmp.eq.f32.partialorder %v318, %v574
    %vm599 = vcmp.eq.f32.partialorder %v318, %v576
    %vm600 = vcmp.eq.f32.partialorder %v318, %v578
    %vm601 = vcmp.eq.f32.partialorder %v318, %v580
    %vm602 = vcmp.eq.f32.partialorder %v318, %v582
    %vm603 = vcmp.eq.f32.partialorder %v318, %v584
    %vm604 = vcmp.eq.f32.partialorder %v318, %v586
    %vm605 = vcmp.eq.f32.partialorder %v318, %v588
    %vm606 = vcmp.eq.f32.partialorder %v318, %v590
    %v607 = vsel %vm591, 1, 0
    %v608 = vsel %vm592, 1, 0
    %v609 = vsel %vm593, 1, 0
    %v610 = vsel %vm594, 1, 0
    %v611 = vsel %vm595, 1, 0
    %v612 = vsel %vm596, 1, 0
    %v613 = vsel %vm597, 1, 0
    %v614 = vsel %vm598, 1, 0
    %v615 = vsel %vm599, 1, 0
    %v616 = vsel %vm600, 1, 0
    %v617 = vsel %vm601, 1, 0
    %v618 = vsel %vm602, 1, 0
    %v619 = vsel %vm603, 1, 0
    %v620 = vsel %vm604, 1, 0
    %v621 = vsel %vm605, 1, 0
    %v622 = vsel %vm606, 1, 0
    %v623 = vcvt.s32.f32 %v607
    %v624 = vcvt.s32.f32 %v608
    %v625 = vcvt.s32.f32 %v609
    %v626 = vcvt.s32.f32 %v610
    %v627 = vcvt.s32.f32 %v611
    %v628 = vcvt.s32.f32 %v612
    %v629 = vcvt.s32.f32 %v613
    %v630 = vcvt.s32.f32 %v614
    %v631 = vcvt.s32.f32 %v615
    %v632 = vcvt.s32.f32 %v616
    %v633 = vcvt.s32.f32 %v617
    %v634 = vcvt.s32.f32 %v618
    %v635 = vcvt.s32.f32 %v619
    %v636 = vcvt.s32.f32 %v620
    %v637 = vcvt.s32.f32 %v621
    %v638 = vcvt.s32.f32 %v622
    %v639 = vadd.f32 %v463, %v623
    %v640 = vadd.f32 %v464, %v624
    %v641 = vadd.f32 %v465, %v625
    %v642 = vadd.f32 %v466, %v626
    %v643 = vadd.f32 %v467, %v627
    %v644 = vadd.f32 %v468, %v628
    %v645 = vadd.f32 %v469, %v629
    %v646 = vadd.f32 %v470, %v630
    %v647 = vadd.f32 %v471, %v631
    %v648 = vadd.f32 %v472, %v632
    %v649 = vadd.f32 %v473, %v633
    %v650 = vadd.f32 %v474, %v634
    %v651 = vadd.f32 %v475, %v635
    %v652 = vadd.f32 %v476, %v636
    %v653 = vadd.f32 %v477, %v637
    %v654 = vadd.f32 %v478, %v638
    %v655 = vsel %vm591, 3e+38, %v479
    %v656 = vsel %vm592, 3e+38, %v480
    %v657 = vsel %vm593, 3e+38, %v481
    %v658 = vsel %vm594, 3e+38, %v482
    %v659 = vsel %vm595, 3e+38, %v483
    %v660 = vsel %vm596, 3e+38, %v484
    %v661 = vsel %vm597, 3e+38, %v485
    %v662 = vsel %vm598, 3e+38, %v486
    %v663 = vsel %vm599, 3e+38, %v487
    %v664 = vsel %vm600, 3e+38, %v488
    %v665 = vsel %vm601, 3e+38, %v489
    %v666 = vsel %vm602, 3e+38, %v490
    %v667 = vsel %vm603, 3e+38, %v491
    %v668 = vsel %vm604, 3e+38, %v492
    %v669 = vsel %vm605, 3e+38, %v493
    %v670 = vsel %vm606, 3e+38, %v494
    %671 = vmin.xlane.f32.xlu0 %v655
    %v672 = vpop.xlane.xlu0 %671
    %673 = vmin.xlane.f32.xlu0 %v656
    %v674 = vpop.xlane.xlu0 %673
    %675 = vmin.xlane.f32.xlu0 %v657
    %v676 = vpop.xlane.xlu0 %675
    %677 = vmin.xlane.f32.xlu0 %v658
    %v678 = vpop.xlane.xlu0 %677
    %679 = vmin.xlane.f32.xlu0 %v659
    %v680 = vpop.xlane.xlu0 %679
    %681 = vmin.xlane.f32.xlu0 %v660
    %v682 = vpop.xlane.xlu0 %681
    %683 = vmin.xlane.f32.xlu0 %v661
    %v684 = vpop.xlane.xlu0 %683
    %685 = vmin.xlane.f32.xlu0 %v662
    %v686 = vpop.xlane.xlu0 %685
    %687 = vmin.xlane.f32.xlu0 %v663
    %v688 = vpop.xlane.xlu0 %687
    %689 = vmin.xlane.f32.xlu0 %v664
    %v690 = vpop.xlane.xlu0 %689
    %691 = vmin.xlane.f32.xlu0 %v665
    %v692 = vpop.xlane.xlu0 %691
    %693 = vmin.xlane.f32.xlu0 %v666
    %v694 = vpop.xlane.xlu0 %693
    %695 = vmin.xlane.f32.xlu0 %v667
    %v696 = vpop.xlane.xlu0 %695
    %697 = vmin.xlane.f32.xlu0 %v668
    %v698 = vpop.xlane.xlu0 %697
    %699 = vmin.xlane.f32.xlu0 %v669
    %v700 = vpop.xlane.xlu0 %699
    %701 = vmin.xlane.f32.xlu0 %v670
    %v702 = vpop.xlane.xlu0 %701
    %vm703 = vcmp.le.f32.partialorder %v655, %v672
    %vm704 = vcmp.le.f32.partialorder %v656, %v674
    %vm705 = vcmp.le.f32.partialorder %v657, %v676
    %vm706 = vcmp.le.f32.partialorder %v658, %v678
    %vm707 = vcmp.le.f32.partialorder %v659, %v680
    %vm708 = vcmp.le.f32.partialorder %v660, %v682
    %vm709 = vcmp.le.f32.partialorder %v661, %v684
    %vm710 = vcmp.le.f32.partialorder %v662, %v686
    %vm711 = vcmp.le.f32.partialorder %v663, %v688
    %vm712 = vcmp.le.f32.partialorder %v664, %v690
    %vm713 = vcmp.le.f32.partialorder %v665, %v692
    %vm714 = vcmp.le.f32.partialorder %v666, %v694
    %vm715 = vcmp.le.f32.partialorder %v667, %v696
    %vm716 = vcmp.le.f32.partialorder %v668, %v698
    %vm717 = vcmp.le.f32.partialorder %v669, %v700
    %vm718 = vcmp.le.f32.partialorder %v670, %v702
    %v719 = vsel %vm703, %v318, 128.0
    %v720 = vsel %vm704, %v318, 128.0
    %v721 = vsel %vm705, %v318, 128.0
    %v722 = vsel %vm706, %v318, 128.0
    %v723 = vsel %vm707, %v318, 128.0
    %v724 = vsel %vm708, %v318, 128.0
    %v725 = vsel %vm709, %v318, 128.0
    %v726 = vsel %vm710, %v318, 128.0
    %v727 = vsel %vm711, %v318, 128.0
    %v728 = vsel %vm712, %v318, 128.0
    %v729 = vsel %vm713, %v318, 128.0
    %v730 = vsel %vm714, %v318, 128.0
    %v731 = vsel %vm715, %v318, 128.0
    %v732 = vsel %vm716, %v318, 128.0
    %v733 = vsel %vm717, %v318, 128.0
    %v734 = vsel %vm718, %v318, 128.0
    %735 = vmin.xlane.f32.xlu0 %v719
    %v736 = vpop.xlane.xlu0 %735
    %737 = vmin.xlane.f32.xlu0 %v720
    %v738 = vpop.xlane.xlu0 %737
    %739 = vmin.xlane.f32.xlu0 %v721
    %v740 = vpop.xlane.xlu0 %739
    %741 = vmin.xlane.f32.xlu0 %v722
    %v742 = vpop.xlane.xlu0 %741
    %743 = vmin.xlane.f32.xlu0 %v723
    %v744 = vpop.xlane.xlu0 %743
    %745 = vmin.xlane.f32.xlu0 %v724
    %v746 = vpop.xlane.xlu0 %745
    %747 = vmin.xlane.f32.xlu0 %v725
    %v748 = vpop.xlane.xlu0 %747
    %749 = vmin.xlane.f32.xlu0 %v726
    %v750 = vpop.xlane.xlu0 %749
    %751 = vmin.xlane.f32.xlu0 %v727
    %v752 = vpop.xlane.xlu0 %751
    %753 = vmin.xlane.f32.xlu0 %v728
    %v754 = vpop.xlane.xlu0 %753
    %755 = vmin.xlane.f32.xlu0 %v729
    %v756 = vpop.xlane.xlu0 %755
    %757 = vmin.xlane.f32.xlu0 %v730
    %v758 = vpop.xlane.xlu0 %757
    %759 = vmin.xlane.f32.xlu0 %v731
    %v760 = vpop.xlane.xlu0 %759
    %761 = vmin.xlane.f32.xlu0 %v732
    %v762 = vpop.xlane.xlu0 %761
    %763 = vmin.xlane.f32.xlu0 %v733
    %v764 = vpop.xlane.xlu0 %763
    %765 = vmin.xlane.f32.xlu0 %v734
    %v766 = vpop.xlane.xlu0 %765
    %vm767 = vcmp.eq.f32.partialorder %v318, %v736
    %vm768 = vcmp.eq.f32.partialorder %v318, %v738
    %vm769 = vcmp.eq.f32.partialorder %v318, %v740
    %vm770 = vcmp.eq.f32.partialorder %v318, %v742
    %vm771 = vcmp.eq.f32.partialorder %v318, %v744
    %vm772 = vcmp.eq.f32.partialorder %v318, %v746
    %vm773 = vcmp.eq.f32.partialorder %v318, %v748
    %vm774 = vcmp.eq.f32.partialorder %v318, %v750
    %vm775 = vcmp.eq.f32.partialorder %v318, %v752
    %vm776 = vcmp.eq.f32.partialorder %v318, %v754
    %vm777 = vcmp.eq.f32.partialorder %v318, %v756
    %vm778 = vcmp.eq.f32.partialorder %v318, %v758
    %vm779 = vcmp.eq.f32.partialorder %v318, %v760
    %vm780 = vcmp.eq.f32.partialorder %v318, %v762
    %vm781 = vcmp.eq.f32.partialorder %v318, %v764
    %vm782 = vcmp.eq.f32.partialorder %v318, %v766
    %v783 = vsel %vm767, 1, 0
    %v784 = vsel %vm768, 1, 0
    %v785 = vsel %vm769, 1, 0
    %v786 = vsel %vm770, 1, 0
    %v787 = vsel %vm771, 1, 0
    %v788 = vsel %vm772, 1, 0
    %v789 = vsel %vm773, 1, 0
    %v790 = vsel %vm774, 1, 0
    %v791 = vsel %vm775, 1, 0
    %v792 = vsel %vm776, 1, 0
    %v793 = vsel %vm777, 1, 0
    %v794 = vsel %vm778, 1, 0
    %v795 = vsel %vm779, 1, 0
    %v796 = vsel %vm780, 1, 0
    %v797 = vsel %vm781, 1, 0
    %v798 = vsel %vm782, 1, 0
    %v799 = vcvt.s32.f32 %v783
    %v800 = vcvt.s32.f32 %v784
    %v801 = vcvt.s32.f32 %v785
    %v802 = vcvt.s32.f32 %v786
    %v803 = vcvt.s32.f32 %v787
    %v804 = vcvt.s32.f32 %v788
    %v805 = vcvt.s32.f32 %v789
    %v806 = vcvt.s32.f32 %v790
    %v807 = vcvt.s32.f32 %v791
    %v808 = vcvt.s32.f32 %v792
    %v809 = vcvt.s32.f32 %v793
    %v810 = vcvt.s32.f32 %v794
    %v811 = vcvt.s32.f32 %v795
    %v812 = vcvt.s32.f32 %v796
    %v813 = vcvt.s32.f32 %v797
    %v814 = vcvt.s32.f32 %v798
    %v815 = vadd.f32 %v639, %v799
    %v816 = vadd.f32 %v640, %v800
    %v817 = vadd.f32 %v641, %v801
    %v818 = vadd.f32 %v642, %v802
    %v819 = vadd.f32 %v643, %v803
    %v820 = vadd.f32 %v644, %v804
    %v821 = vadd.f32 %v645, %v805
    %v822 = vadd.f32 %v646, %v806
    %v823 = vadd.f32 %v647, %v807
    %v824 = vadd.f32 %v648, %v808
    %v825 = vadd.f32 %v649, %v809
    %v826 = vadd.f32 %v650, %v810
    %v827 = vadd.f32 %v651, %v811
    %v828 = vadd.f32 %v652, %v812
    %v829 = vadd.f32 %v653, %v813
    %v830 = vadd.f32 %v654, %v814
    %v831 = vsel %vm767, 3e+38, %v655
    %v832 = vsel %vm768, 3e+38, %v656
    %v833 = vsel %vm769, 3e+38, %v657
    %v834 = vsel %vm770, 3e+38, %v658
    %v835 = vsel %vm771, 3e+38, %v659
    %v836 = vsel %vm772, 3e+38, %v660
    %v837 = vsel %vm773, 3e+38, %v661
    %v838 = vsel %vm774, 3e+38, %v662
    %v839 = vsel %vm775, 3e+38, %v663
    %v840 = vsel %vm776, 3e+38, %v664
    %v841 = vsel %vm777, 3e+38, %v665
    %v842 = vsel %vm778, 3e+38, %v666
    %v843 = vsel %vm779, 3e+38, %v667
    %v844 = vsel %vm780, 3e+38, %v668
    %v845 = vsel %vm781, 3e+38, %v669
    %v846 = vsel %vm782, 3e+38, %v670
    %847 = vmin.xlane.f32.xlu0 %v831
    %v848 = vpop.xlane.xlu0 %847
    %849 = vmin.xlane.f32.xlu0 %v832
    %v850 = vpop.xlane.xlu0 %849
    %851 = vmin.xlane.f32.xlu0 %v833
    %v852 = vpop.xlane.xlu0 %851
    %853 = vmin.xlane.f32.xlu0 %v834
    %v854 = vpop.xlane.xlu0 %853
    %855 = vmin.xlane.f32.xlu0 %v835
    %v856 = vpop.xlane.xlu0 %855
    %857 = vmin.xlane.f32.xlu0 %v836
    %v858 = vpop.xlane.xlu0 %857
    %859 = vmin.xlane.f32.xlu0 %v837
    %v860 = vpop.xlane.xlu0 %859
    %861 = vmin.xlane.f32.xlu0 %v838
    %v862 = vpop.xlane.xlu0 %861
    %863 = vmin.xlane.f32.xlu0 %v839
    %v864 = vpop.xlane.xlu0 %863
    %865 = vmin.xlane.f32.xlu0 %v840
    %v866 = vpop.xlane.xlu0 %865
    %867 = vmin.xlane.f32.xlu0 %v841
    %v868 = vpop.xlane.xlu0 %867
    %869 = vmin.xlane.f32.xlu0 %v842
    %v870 = vpop.xlane.xlu0 %869
    %871 = vmin.xlane.f32.xlu0 %v843
    %v872 = vpop.xlane.xlu0 %871
    %873 = vmin.xlane.f32.xlu0 %v844
    %v874 = vpop.xlane.xlu0 %873
    %875 = vmin.xlane.f32.xlu0 %v845
    %v876 = vpop.xlane.xlu0 %875
    %877 = vmin.xlane.f32.xlu0 %v846
    %v878 = vpop.xlane.xlu0 %877
    %vm879 = vcmp.le.f32.partialorder %v831, %v848
    %vm880 = vcmp.le.f32.partialorder %v832, %v850
    %vm881 = vcmp.le.f32.partialorder %v833, %v852
    %vm882 = vcmp.le.f32.partialorder %v834, %v854
    %vm883 = vcmp.le.f32.partialorder %v835, %v856
    %vm884 = vcmp.le.f32.partialorder %v836, %v858
    %vm885 = vcmp.le.f32.partialorder %v837, %v860
    %vm886 = vcmp.le.f32.partialorder %v838, %v862
    %vm887 = vcmp.le.f32.partialorder %v839, %v864
    %vm888 = vcmp.le.f32.partialorder %v840, %v866
    %vm889 = vcmp.le.f32.partialorder %v841, %v868
    %vm890 = vcmp.le.f32.partialorder %v842, %v870
    %vm891 = vcmp.le.f32.partialorder %v843, %v872
    %vm892 = vcmp.le.f32.partialorder %v844, %v874
    %vm893 = vcmp.le.f32.partialorder %v845, %v876
    %vm894 = vcmp.le.f32.partialorder %v846, %v878
    %v895 = vsel %vm879, %v318, 128.0
    %v896 = vsel %vm880, %v318, 128.0
    %v897 = vsel %vm881, %v318, 128.0
    %v898 = vsel %vm882, %v318, 128.0
    %v899 = vsel %vm883, %v318, 128.0
    %v900 = vsel %vm884, %v318, 128.0
    %v901 = vsel %vm885, %v318, 128.0
    %v902 = vsel %vm886, %v318, 128.0
    %v903 = vsel %vm887, %v318, 128.0
    %v904 = vsel %vm888, %v318, 128.0
    %v905 = vsel %vm889, %v318, 128.0
    %v906 = vsel %vm890, %v318, 128.0
    %v907 = vsel %vm891, %v318, 128.0
    %v908 = vsel %vm892, %v318, 128.0
    %v909 = vsel %vm893, %v318, 128.0
    %v910 = vsel %vm894, %v318, 128.0
    %911 = vmin.xlane.f32.xlu0 %v895
    %v912 = vpop.xlane.xlu0 %911
    %913 = vmin.xlane.f32.xlu0 %v896
    %v914 = vpop.xlane.xlu0 %913
    %915 = vmin.xlane.f32.xlu0 %v897
    %v916 = vpop.xlane.xlu0 %915
    %917 = vmin.xlane.f32.xlu0 %v898
    %v918 = vpop.xlane.xlu0 %917
    %919 = vmin.xlane.f32.xlu0 %v899
    %v920 = vpop.xlane.xlu0 %919
    %921 = vmin.xlane.f32.xlu0 %v900
    %v922 = vpop.xlane.xlu0 %921
    %923 = vmin.xlane.f32.xlu0 %v901
    %v924 = vpop.xlane.xlu0 %923
    %925 = vmin.xlane.f32.xlu0 %v902
    %v926 = vpop.xlane.xlu0 %925
    %927 = vmin.xlane.f32.xlu0 %v903
    %v928 = vpop.xlane.xlu0 %927
    %929 = vmin.xlane.f32.xlu0 %v904
    %v930 = vpop.xlane.xlu0 %929
    %931 = vmin.xlane.f32.xlu0 %v905
    %v932 = vpop.xlane.xlu0 %931
    %933 = vmin.xlane.f32.xlu0 %v906
    %v934 = vpop.xlane.xlu0 %933
    %935 = vmin.xlane.f32.xlu0 %v907
    %v936 = vpop.xlane.xlu0 %935
    %937 = vmin.xlane.f32.xlu0 %v908
    %v938 = vpop.xlane.xlu0 %937
    %939 = vmin.xlane.f32.xlu0 %v909
    %v940 = vpop.xlane.xlu0 %939
    %941 = vmin.xlane.f32.xlu0 %v910
    %v942 = vpop.xlane.xlu0 %941
    %vm943 = vcmp.eq.f32.partialorder %v318, %v912
    %vm944 = vcmp.eq.f32.partialorder %v318, %v914
    %vm945 = vcmp.eq.f32.partialorder %v318, %v916
    %vm946 = vcmp.eq.f32.partialorder %v318, %v918
    %vm947 = vcmp.eq.f32.partialorder %v318, %v920
    %vm948 = vcmp.eq.f32.partialorder %v318, %v922
    %vm949 = vcmp.eq.f32.partialorder %v318, %v924
    %vm950 = vcmp.eq.f32.partialorder %v318, %v926
    %vm951 = vcmp.eq.f32.partialorder %v318, %v928
    %vm952 = vcmp.eq.f32.partialorder %v318, %v930
    %vm953 = vcmp.eq.f32.partialorder %v318, %v932
    %vm954 = vcmp.eq.f32.partialorder %v318, %v934
    %vm955 = vcmp.eq.f32.partialorder %v318, %v936
    %vm956 = vcmp.eq.f32.partialorder %v318, %v938
    %vm957 = vcmp.eq.f32.partialorder %v318, %v940
    %vm958 = vcmp.eq.f32.partialorder %v318, %v942
    %v959 = vsel %vm943, 1, 0
    %v960 = vsel %vm944, 1, 0
    %v961 = vsel %vm945, 1, 0
    %v962 = vsel %vm946, 1, 0
    %v963 = vsel %vm947, 1, 0
    %v964 = vsel %vm948, 1, 0
    %v965 = vsel %vm949, 1, 0
    %v966 = vsel %vm950, 1, 0
    %v967 = vsel %vm951, 1, 0
    %v968 = vsel %vm952, 1, 0
    %v969 = vsel %vm953, 1, 0
    %v970 = vsel %vm954, 1, 0
    %v971 = vsel %vm955, 1, 0
    %v972 = vsel %vm956, 1, 0
    %v973 = vsel %vm957, 1, 0
    %v974 = vsel %vm958, 1, 0
    %v975 = vcvt.s32.f32 %v959
    %v976 = vcvt.s32.f32 %v960
    %v977 = vcvt.s32.f32 %v961
    %v978 = vcvt.s32.f32 %v962
    %v979 = vcvt.s32.f32 %v963
    %v980 = vcvt.s32.f32 %v964
    %v981 = vcvt.s32.f32 %v965
    %v982 = vcvt.s32.f32 %v966
    %v983 = vcvt.s32.f32 %v967
    %v984 = vcvt.s32.f32 %v968
    %v985 = vcvt.s32.f32 %v969
    %v986 = vcvt.s32.f32 %v970
    %v987 = vcvt.s32.f32 %v971
    %v988 = vcvt.s32.f32 %v972
    %v989 = vcvt.s32.f32 %v973
    %v990 = vcvt.s32.f32 %v974
    %v991 = vadd.f32 %v815, %v975
    %v992 = vadd.f32 %v816, %v976
    %v993 = vadd.f32 %v817, %v977
    %v994 = vadd.f32 %v818, %v978
    %v995 = vadd.f32 %v819, %v979
    %v996 = vadd.f32 %v820, %v980
    %v997 = vadd.f32 %v821, %v981
    %v998 = vadd.f32 %v822, %v982
    %v999 = vadd.f32 %v823, %v983
    %v1000 = vadd.f32 %v824, %v984
    %v1001 = vadd.f32 %v825, %v985
    %v1002 = vadd.f32 %v826, %v986
    %v1003 = vadd.f32 %v827, %v987
    %v1004 = vadd.f32 %v828, %v988
    %v1005 = vadd.f32 %v829, %v989
    %v1006 = vadd.f32 %v830, %v990
    %v1007 = vsel %vm943, 3e+38, %v831
    %v1008 = vsel %vm944, 3e+38, %v832
    %v1009 = vsel %vm945, 3e+38, %v833
    %v1010 = vsel %vm946, 3e+38, %v834
    %v1011 = vsel %vm947, 3e+38, %v835
    %v1012 = vsel %vm948, 3e+38, %v836
    %v1013 = vsel %vm949, 3e+38, %v837
    %v1014 = vsel %vm950, 3e+38, %v838
    %v1015 = vsel %vm951, 3e+38, %v839
    %v1016 = vsel %vm952, 3e+38, %v840
    %v1017 = vsel %vm953, 3e+38, %v841
    %v1018 = vsel %vm954, 3e+38, %v842
    %v1019 = vsel %vm955, 3e+38, %v843
    %v1020 = vsel %vm956, 3e+38, %v844
    %v1021 = vsel %vm957, 3e+38, %v845
    %v1022 = vsel %vm958, 3e+38, %v846
    %1023 = vmin.xlane.f32.xlu0 %v1007
    %v1024 = vpop.xlane.xlu0 %1023
    %1025 = vmin.xlane.f32.xlu0 %v1008
    %v1026 = vpop.xlane.xlu0 %1025
    %1027 = vmin.xlane.f32.xlu0 %v1009
    %v1028 = vpop.xlane.xlu0 %1027
    %1029 = vmin.xlane.f32.xlu0 %v1010
    %v1030 = vpop.xlane.xlu0 %1029
    %1031 = vmin.xlane.f32.xlu0 %v1011
    %v1032 = vpop.xlane.xlu0 %1031
    %1033 = vmin.xlane.f32.xlu0 %v1012
    %v1034 = vpop.xlane.xlu0 %1033
    %1035 = vmin.xlane.f32.xlu0 %v1013
    %v1036 = vpop.xlane.xlu0 %1035
    %1037 = vmin.xlane.f32.xlu0 %v1014
    %v1038 = vpop.xlane.xlu0 %1037
    %1039 = vmin.xlane.f32.xlu0 %v1015
    %v1040 = vpop.xlane.xlu0 %1039
    %1041 = vmin.xlane.f32.xlu0 %v1016
    %v1042 = vpop.xlane.xlu0 %1041
    %1043 = vmin.xlane.f32.xlu0 %v1017
    %v1044 = vpop.xlane.xlu0 %1043
    %1045 = vmin.xlane.f32.xlu0 %v1018
    %v1046 = vpop.xlane.xlu0 %1045
    %1047 = vmin.xlane.f32.xlu0 %v1019
    %v1048 = vpop.xlane.xlu0 %1047
    %1049 = vmin.xlane.f32.xlu0 %v1020
    %v1050 = vpop.xlane.xlu0 %1049
    %1051 = vmin.xlane.f32.xlu0 %v1021
    %v1052 = vpop.xlane.xlu0 %1051
    %1053 = vmin.xlane.f32.xlu0 %v1022
    %v1054 = vpop.xlane.xlu0 %1053
    %vm1055 = vcmp.le.f32.partialorder %v1007, %v1024
    %vm1056 = vcmp.le.f32.partialorder %v1008, %v1026
    %vm1057 = vcmp.le.f32.partialorder %v1009, %v1028
    %vm1058 = vcmp.le.f32.partialorder %v1010, %v1030
    %vm1059 = vcmp.le.f32.partialorder %v1011, %v1032
    %vm1060 = vcmp.le.f32.partialorder %v1012, %v1034
    %vm1061 = vcmp.le.f32.partialorder %v1013, %v1036
    %vm1062 = vcmp.le.f32.partialorder %v1014, %v1038
    %vm1063 = vcmp.le.f32.partialorder %v1015, %v1040
    %vm1064 = vcmp.le.f32.partialorder %v1016, %v1042
    %vm1065 = vcmp.le.f32.partialorder %v1017, %v1044
    %vm1066 = vcmp.le.f32.partialorder %v1018, %v1046
    %vm1067 = vcmp.le.f32.partialorder %v1019, %v1048
    %vm1068 = vcmp.le.f32.partialorder %v1020, %v1050
    %vm1069 = vcmp.le.f32.partialorder %v1021, %v1052
    %vm1070 = vcmp.le.f32.partialorder %v1022, %v1054
    %v1071 = vsel %vm1055, %v318, 128.0
    %v1072 = vsel %vm1056, %v318, 128.0
    %v1073 = vsel %vm1057, %v318, 128.0
    %v1074 = vsel %vm1058, %v318, 128.0
    %v1075 = vsel %vm1059, %v318, 128.0
    %v1076 = vsel %vm1060, %v318, 128.0
    %v1077 = vsel %vm1061, %v318, 128.0
    %v1078 = vsel %vm1062, %v318, 128.0
    %v1079 = vsel %vm1063, %v318, 128.0
    %v1080 = vsel %vm1064, %v318, 128.0
    %v1081 = vsel %vm1065, %v318, 128.0
    %v1082 = vsel %vm1066, %v318, 128.0
    %v1083 = vsel %vm1067, %v318, 128.0
    %v1084 = vsel %vm1068, %v318, 128.0
    %v1085 = vsel %vm1069, %v318, 128.0
    %v1086 = vsel %vm1070, %v318, 128.0
    %1087 = vmin.xlane.f32.xlu0 %v1071
    %v1088 = vpop.xlane.xlu0 %1087
    %1089 = vmin.xlane.f32.xlu0 %v1072
    %v1090 = vpop.xlane.xlu0 %1089
    %1091 = vmin.xlane.f32.xlu0 %v1073
    %v1092 = vpop.xlane.xlu0 %1091
    %1093 = vmin.xlane.f32.xlu0 %v1074
    %v1094 = vpop.xlane.xlu0 %1093
    %1095 = vmin.xlane.f32.xlu0 %v1075
    %v1096 = vpop.xlane.xlu0 %1095
    %1097 = vmin.xlane.f32.xlu0 %v1076
    %v1098 = vpop.xlane.xlu0 %1097
    %1099 = vmin.xlane.f32.xlu0 %v1077
    %v1100 = vpop.xlane.xlu0 %1099
    %1101 = vmin.xlane.f32.xlu0 %v1078
    %v1102 = vpop.xlane.xlu0 %1101
    %1103 = vmin.xlane.f32.xlu0 %v1079
    %v1104 = vpop.xlane.xlu0 %1103
    %1105 = vmin.xlane.f32.xlu0 %v1080
    %v1106 = vpop.xlane.xlu0 %1105
    %1107 = vmin.xlane.f32.xlu0 %v1081
    %v1108 = vpop.xlane.xlu0 %1107
    %1109 = vmin.xlane.f32.xlu0 %v1082
    %v1110 = vpop.xlane.xlu0 %1109
    %1111 = vmin.xlane.f32.xlu0 %v1083
    %v1112 = vpop.xlane.xlu0 %1111
    %1113 = vmin.xlane.f32.xlu0 %v1084
    %v1114 = vpop.xlane.xlu0 %1113
    %1115 = vmin.xlane.f32.xlu0 %v1085
    %v1116 = vpop.xlane.xlu0 %1115
    %1117 = vmin.xlane.f32.xlu0 %v1086
    %v1118 = vpop.xlane.xlu0 %1117
    %vm1119 = vcmp.eq.f32.partialorder %v318, %v1088
    %vm1120 = vcmp.eq.f32.partialorder %v318, %v1090
    %vm1121 = vcmp.eq.f32.partialorder %v318, %v1092
    %vm1122 = vcmp.eq.f32.partialorder %v318, %v1094
    %vm1123 = vcmp.eq.f32.partialorder %v318, %v1096
    %vm1124 = vcmp.eq.f32.partialorder %v318, %v1098
    %vm1125 = vcmp.eq.f32.partialorder %v318, %v1100
    %vm1126 = vcmp.eq.f32.partialorder %v318, %v1102
    %vm1127 = vcmp.eq.f32.partialorder %v318, %v1104
    %vm1128 = vcmp.eq.f32.partialorder %v318, %v1106
    %vm1129 = vcmp.eq.f32.partialorder %v318, %v1108
    %vm1130 = vcmp.eq.f32.partialorder %v318, %v1110
    %vm1131 = vcmp.eq.f32.partialorder %v318, %v1112
    %vm1132 = vcmp.eq.f32.partialorder %v318, %v1114
    %vm1133 = vcmp.eq.f32.partialorder %v318, %v1116
    %vm1134 = vcmp.eq.f32.partialorder %v318, %v1118
    %v1135 = vsel %vm1119, 1, 0
    %v1136 = vsel %vm1120, 1, 0
    %v1137 = vsel %vm1121, 1, 0
    %v1138 = vsel %vm1122, 1, 0
    %v1139 = vsel %vm1123, 1, 0
    %v1140 = vsel %vm1124, 1, 0
    %v1141 = vsel %vm1125, 1, 0
    %v1142 = vsel %vm1126, 1, 0
    %v1143 = vsel %vm1127, 1, 0
    %v1144 = vsel %vm1128, 1, 0
    %v1145 = vsel %vm1129, 1, 0
    %v1146 = vsel %vm1130, 1, 0
    %v1147 = vsel %vm1131, 1, 0
    %v1148 = vsel %vm1132, 1, 0
    %v1149 = vsel %vm1133, 1, 0
    %v1150 = vsel %vm1134, 1, 0
    %v1151 = vcvt.s32.f32 %v1135
    %v1152 = vcvt.s32.f32 %v1136
    %v1153 = vcvt.s32.f32 %v1137
    %v1154 = vcvt.s32.f32 %v1138
    %v1155 = vcvt.s32.f32 %v1139
    %v1156 = vcvt.s32.f32 %v1140
    %v1157 = vcvt.s32.f32 %v1141
    %v1158 = vcvt.s32.f32 %v1142
    %v1159 = vcvt.s32.f32 %v1143
    %v1160 = vcvt.s32.f32 %v1144
    %v1161 = vcvt.s32.f32 %v1145
    %v1162 = vcvt.s32.f32 %v1146
    %v1163 = vcvt.s32.f32 %v1147
    %v1164 = vcvt.s32.f32 %v1148
    %v1165 = vcvt.s32.f32 %v1149
    %v1166 = vcvt.s32.f32 %v1150
    %v1167 = vadd.f32 %v991, %v1151
    %v1168 = vadd.f32 %v992, %v1152
    %v1169 = vadd.f32 %v993, %v1153
    %v1170 = vadd.f32 %v994, %v1154
    %v1171 = vadd.f32 %v995, %v1155
    %v1172 = vadd.f32 %v996, %v1156
    %v1173 = vadd.f32 %v997, %v1157
    %v1174 = vadd.f32 %v998, %v1158
    %v1175 = vadd.f32 %v999, %v1159
    %v1176 = vadd.f32 %v1000, %v1160
    %v1177 = vadd.f32 %v1001, %v1161
    %v1178 = vadd.f32 %v1002, %v1162
    %v1179 = vadd.f32 %v1003, %v1163
    %v1180 = vadd.f32 %v1004, %v1164
    %v1181 = vadd.f32 %v1005, %v1165
    %v1182 = vadd.f32 %v1006, %v1166
    %1183 = vmatprep.subr.mxu0 0.0
    %1184 = vmatpush1.xpose.msra.mxu0 %v1182
    %1185 = vmatprep.subr.mxu0 0.0
    %1186 = vmatpush1.xpose.msra.mxu0 %v1181
    %1187 = vmatprep.subr.mxu0 0.0
    %1188 = vmatpush1.xpose.msra.mxu0 %v1180
    %1189 = vmatprep.subr.mxu0 0.0
    %1190 = vmatpush1.xpose.msra.mxu0 %v1179
    %1191 = vmatprep.subr.mxu0 0.0
    %1192 = vmatpush1.xpose.msra.mxu0 %v1178
    %1193 = vmatprep.subr.mxu0 0.0
    %1194 = vmatpush1.xpose.msra.mxu0 %v1177
    %1195 = vmatprep.subr.mxu0 0.0
    %1196 = vmatpush1.xpose.msra.mxu0 %v1176
    %1197 = vmatprep.subr.mxu0 0.0
    %1198 = vmatpush1.xpose.msra.mxu0 %v1175
    %1199 = vmatprep.subr.mxu0 0.0
    %1200 = vmatpush1.xpose.msra.mxu0 %v1174
    %1201 = vmatprep.subr.mxu0 0.0
    %1202 = vmatpush1.xpose.msra.mxu0 %v1173
    %1203 = vmatprep.subr.mxu0 0.0
    %1204 = vmatpush1.xpose.msra.mxu0 %v1172
    %1205 = vmatprep.subr.mxu0 0.0
    %1206 = vmatpush1.xpose.msra.mxu0 %v1171
    %1207 = vmatprep.subr.mxu0 0.0
    %1208 = vmatpush1.xpose.msra.mxu0 %v1170
    %1209 = vmatprep.subr.mxu0 0.0
    %1210 = vmatpush1.xpose.msra.mxu0 %v1169
    %1211 = vmatprep.subr.mxu0 0.0
    %1212 = vmatpush1.xpose.msra.mxu0 %v1168
    %1213 = vmatprep.subr.mxu0 0.0
    %1214 = vmatpush1.xpose.msra.mxu0 %v1167
    %1215 = vmatprep.subr.mxu0 0.0
    %1216 = vmatpush2.xpose.msra.mxu0 0.0
    %1217 = vmatprep.subr.mxu0 0.0
    %1218 = vmatpush2.xpose.msra.mxu0 0.0
    %1219 = vmatprep.subr.mxu0 0.0
    %1220 = vmatpush2.xpose.msra.mxu0 0.0
    %1221 = vmatprep.subr.mxu0 0.0
    %1222 = vmatpush2.xpose.msra.mxu0 0.0
    %1223 = vmatprep.subr.mxu0 0.0
    %1224 = vmatpush2.xpose.msra.mxu0 0.0
    %1225 = vmatprep.subr.mxu0 0.0
    %1226 = vmatpush2.xpose.msra.mxu0 0.0
    %1227 = vmatprep.subr.mxu0 0.0
    %1228 = vmatpush2.xpose.msra.mxu0 0.0
    %1229 = vmatprep.subr.mxu0 0.0
    %1230 = vmatpush2.xpose.msra.mxu0 0.0
    %1231 = vmatprep.subr.mxu0 0.0
    %1232 = vmatpush2.xpose.msra.mxu0 0.0
    %1233 = vmatprep.subr.mxu0 0.0
    %1234 = vmatpush2.xpose.msra.mxu0 0.0
    %1235 = vmatprep.subr.mxu0 0.0
    %1236 = vmatpush2.xpose.msra.mxu0 0.0
    %1237 = vmatprep.subr.mxu0 0.0
    %1238 = vmatpush2.xpose.msra.mxu0 0.0
    %1239 = vmatprep.subr.mxu0 0.0
    %1240 = vmatpush2.xpose.msra.mxu0 0.0
    %1241 = vmatprep.subr.mxu0 0.0
    %1242 = vmatpush2.xpose.msra.mxu0 0.0
    %1243 = vmatprep.subr.mxu0 0.0
    %1244 = vmatpush2.xpose.msra.mxu0 0.0
    %1245 = vmatprep.subr.mxu0 0.0
    %1246 = vmatpush2.xpose.msra.mxu0 0.0
    %1247 = vmatprep.mubr.f32.mxu0 0.0
    %1248 = vmatmul.mubr.f32.gmra.mxu0 %v51
    %v1249 = vpop.f32.mrf.mxu0
    %v1250 = vadd.f32 0.0, %v1249
    %v1251 = vpop.f32.mrf.mxu0
    %1252 = vdwg.mxu0
    %1253 = vst [vmem:[#allocation2] sm:$0x1] %v1250
    // Predicated region
    $region18: #{tpu_custom_call.1} parent=1 // pred_check
      _
    $region19: #{tpu_custom_call.1} parent=1 // pred_check_branch
      %1255 = sbr.rel (0) target = $region21
    $region20: #{tpu_custom_call.1} parent=1 // pred_region
      %s1257 = ssub.s32 16, 16
      %1258 = vsyncadd [#allocation3], %s1257
      %s1260 = sshll.u32 [#allocation2], 4
      %s1261 = int_to_ptr.vmem [resolvable:$true] %s1260
      %1263 = dma.vmem_to_hbm [thread:$0]  %s1261, 16, %s4, [#allocation3]
    $region21: #{tpu_custom_call.1} parent=1 // pred_fallthru
      _
    // Predicated region
    $region22: #{tpu_custom_call.1} parent=1 // pred_check
      _
    $region23: #{tpu_custom_call.1} parent=1 // pred_check_branch
      %1265 = sbr.rel (0) target = $region25
    $region24: #{tpu_custom_call.1} parent=1 // pred_region
      %1266 = dma.done [#allocation3], 16
    $region25: #{tpu_custom_call.1} parent=1 // pred_fallthru
      _
    %1267 = vsyncpa [#allocation3], 1

</llo_original>
